<compile_context>
chip_gen: v7x
topology: tpu7x:2x2x1
jax: 0.10.0
libtpu: 0.0.40
codegen_flags: <defaults>
</compile_context>

<pallas_src>
import math
import functools

import jax
import jax.numpy as jnp
from jax import lax
from jax.experimental import pallas as pl
from jax.experimental.pallas import tpu as pltpu


def _default_vmem_limit():
    try:
        cap = pltpu.get_tpu_info().vmem_capacity_bytes
        return int(min(cap * 3 // 4, 100 * 1024 * 1024))
    except Exception:
        return 48 * 1024 * 1024          # safe fallback (v7x has 64 MiB physical)


VMEM_LIMIT = _default_vmem_limit()
_SQRT1_2 = 0.7071067811865476


def _gelu(x):
    """Exact-erf GELU via Abramowitz-Stegun 7.1.26 (|err| < 1.5e-7).

    Built only from exp / div / where / mul so it lowers cleanly in Mosaic and
    runs on the otherwise-idle EUP slot.
    """
    z = x * _SQRT1_2
    az = jnp.abs(z)
    t = 1.0 / (1.0 + 0.3275911 * az)
    poly = t * (0.254829592 + t * (-0.284496736 + t * (1.421413741
            + t * (-1.453152027 + t * 1.061405429))))
    erf_abs = 1.0 - poly * jnp.exp(-az * az)
    erf = jnp.where(z < 0.0, -erf_abs, erf_abs)
    return 0.5 * x * (1.0 + erf)


def _pick_bg(b, cap):
    """Largest divisor of b that is <= cap (graphs per grid step, no padding)."""
    for d in range(min(b, cap), 0, -1):
        if b % d == 0:
            return d
    return 1


def _bat_spec(block_shape):
    nd = len(block_shape)
    return pl.BlockSpec(block_shape, lambda g, _nd=nd: (g,) + (0,) * (_nd - 1))


def _rep_spec(shape):
    nd = len(shape)
    return pl.BlockSpec(shape, lambda g, _nd=nd: (0,) * _nd)


# ----------------------------------------------------------------------------
# Fused eigenvalue-sequence encoder:
#   eig linear -> LN -> QKV -> multi-head attention (key mask) -> out-proj
#   -> residual -> LN -> FFN(GELU) -> residual -> decoder
# Outputs: ne_t (B, N, nheads) and attn weights lane-dense (B, N, nheads*N).
# ----------------------------------------------------------------------------

def _encoder_kernel(eeig_ref, kmask_ref,
                    eigw_ref, eigb_ref,
                    ln1g_ref, ln1b_ref,
                    qkvw_ref, qkvb_ref,
                    outw_ref, outb_ref,
                    ln2g_ref, ln2b_ref,
                    f1w_ref, f1b_ref, f2w_ref, f2b_ref,
                    decw_ref, decb_ref,
                    ne_ref, attn_ref, *, nheads):
    BG, N, H1 = eeig_ref.shape
    H = eigw_ref.shape[1]
    dh = H // nheads
    scale = 1.0 / math.sqrt(dh)
    f32 = jnp.float32
    bf16 = jnp.bfloat16

    def _ln(z, g, b):
        mu = jnp.mean(z, axis=-1, keepdims=True)
        var = jnp.mean((z - mu) ** 2, axis=-1, keepdims=True)
        return (z - mu) * lax.rsqrt(var + 1e-5) * g + b

    eeig = eeig_ref[...]                                  # (BG, N, H+1)
    kmask = kmask_ref[...]                                # (BG, 1, N)  1.0 = valid key

    eig = (jnp.dot(eeig.reshape(BG * N, H1).astype(bf16),
                   eigw_ref[...].astype(bf16),
                   preferred_element_type=f32) + eigb_ref[...]).reshape(BG, N, H)

    h = _ln(eig, ln1g_ref[...], ln1b_ref[...])
    qkv = (jnp.dot(h.reshape(BG * N, H).astype(bf16),
                   qkvw_ref[...].astype(bf16),
                   preferred_element_type=f32) + qkvb_ref[...]).reshape(BG, N, 3 * H)

    # per-head attention; out-projection folded into per-head accumulation so no
    # lane concat is needed at the end.
    acc = jnp.zeros((BG * N, H), f32)
    for hd in range(nheads):
        q = qkv[:, :, hd * dh:(hd + 1) * dh]
        k = qkv[:, :, H + hd * dh:H + (hd + 1) * dh]
        v = qkv[:, :, 2 * H + hd * dh:2 * H + (hd + 1) * dh]
        s = jnp.einsum('bqd,bkd->bqk', q.astype(bf16), k.astype(bf16),
                       preferred_element_type=f32) * scale          # (BG, N, N)
        s = jnp.where(kmask > 0.0, s, -1e30)
        s = s - jnp.max(s, axis=-1, keepdims=True)
        p = jnp.exp(s)
        p = p / jnp.sum(p, axis=-1, keepdims=True)   # exact divide: attn is an output
        attn_ref[:, :, hd * N:(hd + 1) * N] = p      # lane-dense store
        ctx = jnp.einsum('bqk,bkd->bqd', p.astype(bf16), v.astype(bf16),
                         preferred_element_type=f32)                 # (BG, N, dh)
        acc = acc + jnp.dot(ctx.reshape(BG * N, dh).astype(bf16),
                            outw_ref[hd * dh:(hd + 1) * dh, :].astype(bf16),
                            preferred_element_type=f32)
    eig = eig + (acc + outb_ref[...]).reshape(BG, N, H)

    h2 = _ln(eig, ln2g_ref[...], ln2b_ref[...])
    f = jnp.dot(h2.reshape(BG * N, H).astype(bf16), f1w_ref[...].astype(bf16),
                preferred_element_type=f32) + f1b_ref[...]
    f = _gelu(f)
    f = jnp.dot(f.astype(bf16), f2w_ref[...].astype(bf16),
                preferred_element_type=f32) + f2b_ref[...]
    eig = eig + f.reshape(BG, N, H)

    ne = jnp.dot(eig.reshape(BG * N, H).astype(bf16), decw_ref[...].astype(bf16),
                 preferred_element_type=f32) + decb_ref[...]
    ne_ref[...] = ne.reshape(BG, N, nheads)


def encoder_pallas(eeig, kmask, p):
    B, N, H1 = eeig.shape
    H = p['hidden']
    nh = p['nheads']
    BG = _pick_bg(B, 8)
    r = lambda v: v.reshape(1, -1)
    weights = [
        p['eig_w'], r(p['eig_b']),
        r(p['mha_norm_g']), r(p['mha_norm_b']),
        p['mha_in_w'], r(p['mha_in_b']),
        p['mha_out_w'], r(p['mha_out_b']),
        r(p['ffn_norm_g']), r(p['ffn_norm_b']),
        p['ffn_w1'], r(p['ffn_b1']),
        p['ffn_w2'], r(p['ffn_b2']),
        p['dec_w'], r(p['dec_b']),
    ]
    in_specs = ([_bat_spec((BG, N, H1)), _bat_spec((BG, 1, N))]
                + [_rep_spec(w.shape) for w in weights])
    kern = functools.partial(_encoder_kernel, nheads=nh)
    return pl.pallas_call(
        kern,
        out_shape=(jax.ShapeDtypeStruct((B, N, nh), jnp.float32),
                   jax.ShapeDtypeStruct((B, N, nh * N), jnp.float32)),
        grid=(B // BG,),
        in_specs=in_specs,
        out_specs=(_bat_spec((BG, N, nh)), _bat_spec((BG, N, nh * N))),
        compiler_params=pltpu.CompilerParams(
            dimension_semantics=("parallel",), vmem_limit_bytes=VMEM_LIMIT),
    )(eeig, kmask, *weights)


# ----------------------------------------------------------------------------
# Fully-fused spectral-bases + filter-encoder + ALL conv layers kernel.
#   bases[(i,j), :] = [delta_ij, (u diag(e_1) u^T)[i,j], ..., (u diag(e_nh) u^T)[i,j]]
#   fb  = src_mask * GELU(GELU(bases @ W1 + b1) @ W2 + b2)          (stays in VMEM)
#   per conv layer l:
#     h1  = GELU(x @ preW_l [broadcast over dst] + onehot(bond) @ (bondTbl @ preW_l) + b)
#     x   = x + sum_src(h1 * fb)
#     x   = x + ReLU(BN2(ReLU(BN1(x @ W1 + b1)) @ W2 + b2))   (BN folded into W/b)
# ----------------------------------------------------------------------------

def _spectral_conv_kernel(x_ref, u_ref, ne_ref, nmask_ref, eidx_ref,
                          fw1h_ref, fw1i_ref, fb1_ref, fw2_ref, fb2_ref,
                          preW_ref, preB_ref, bondW_ref,
                          w1_ref, b1_ref, w2_ref, b2_ref,
                          o_ref, *, nlayer):
    BG, N, H = x_ref.shape
    NN = N * N
    nb = bondW_ref.shape[1]
    f32 = jnp.float32
    bf16 = jnp.bfloat16

    u = u_ref[...]                                       # (BG, N, N)
    ne_t = ne_ref[...]                                   # (BG, N, nheads)
    nmask = nmask_ref[...]                               # (BG, N, 1)   1.0 = valid node

    # ---- spectral bases + filter encoder (fb never leaves VMEM) ----
    # P[b, i*N+j, m] = u[b, i, m] * u[b, j, m]  (broadcast product, no one-hot matmuls)
    P = (u[:, :, None, :] * u[:, None, :, :]).reshape(BG, NN, N)
    # heads folded: A[b, m, :] = sum_c ne_t[b, m, c] * W1[1+c, :]
    A = jnp.dot(ne_t.reshape(BG * N, ne_t.shape[2]).astype(bf16),
                fw1h_ref[...].astype(bf16),
                preferred_element_type=f32).reshape(BG, N, H)
    hf = jnp.einsum('bpm,bmh->bph', P.astype(bf16), A.astype(bf16),
                    preferred_element_type=f32)          # (BG, N^2, H)
    rows = lax.broadcasted_iota(jnp.int32, (N, N, 1), 0)
    cols = lax.broadcasted_iota(jnp.int32, (N, N, 1), 1)
    ident = (rows == cols).astype(f32)                   # (N, N, 1) delta_ij
    hf = hf.reshape(BG, N, N, H) + ident * fw1i_ref[...] + fb1_ref[...]
    hf = _gelu(hf)
    h2 = jnp.dot(hf.reshape(BG * NN, H).astype(bf16), fw2_ref[...].astype(bf16),
                 preferred_element_type=f32).reshape(BG, N, N, H) + fb2_ref[...]
    # zero rows whose SOURCE node is padding (keeps the aggregation exact)
    fb = _gelu(h2) * nmask[:, :, None, :]                # (BG, N_src, N_dst, H)

    # ---- bond one-hot (layer invariant), hoisted out of the layer loop ----
    lanes = lax.broadcasted_iota(jnp.int32, (NN, nb), 1)
    oh = (eidx_ref[...] == lanes).astype(bf16)           # (BG, N^2, nb)

    x = x_ref[...]                                       # (BG, N, H)
    for l in range(nlayer):
        # pre_ffn distributed: (x[src] + bondEmb) @ preW = x@preW [bcast dst] + oh@(bondTbl@preW)
        xW = jnp.dot(x.reshape(BG * N, H).astype(bf16), preW_ref[l].astype(bf16),
                     preferred_element_type=f32).reshape(BG, N, H)
        eeW = jnp.dot(oh.reshape(BG * NN, nb), bondW_ref[l].astype(bf16),
                      preferred_element_type=f32).reshape(BG, N, N, H)
        h1 = _gelu(xW[:, :, None, :] + eeW + preB_ref[l])          # (BG, src, dst, H)
        aggr = jnp.sum(h1 * fb, axis=1)                            # sum over src -> (BG, dst, H)
        x1 = x + aggr

        # ffn: Linear -> BN(eval) -> ReLU -> Linear -> BN(eval) -> ReLU (BN folded)
        y = jnp.dot(x1.reshape(BG * N, H).astype(bf16), w1_ref[l].astype(bf16),
                    preferred_element_type=f32) + b1_ref[l]
        y = jnp.maximum(y, 0.0)
        y = jnp.dot(y.astype(bf16), w2_ref[l].astype(bf16),
                    preferred_element_type=f32) + b2_ref[l]
        y = jnp.maximum(y, 0.0)
        x = x1 + y.reshape(BG, N, H)

    o_ref[...] = x


def spectral_conv_pallas(x0, u, ne_t, nmask, eidx, p, stk):
    B, N, H = x0.shape
    nh = p['nheads']
    L = stk['preW'].shape[0]
    BG = _pick_bg(B, 4)                 # fb + temps live in VMEM: keep BG modest (v7x-safe)
    fw1h = p['filt_w1'][1:]
    fw1i = p['filt_w1'][0:1]
    fb1 = p['filt_b1'].reshape(1, H)
    fw2 = p['filt_w2']
    fb2 = p['filt_b2'].reshape(1, H)
    consts = [fw1h, fw1i, fb1, fw2, fb2,
              stk['preW'], stk['preB'], stk['bondW'],
              stk['w1'], stk['b1'], stk['w2'], stk['b2']]
    in_specs = ([_bat_spec((BG, N, H)), _bat_spec((BG, N, N)),
                 _bat_spec((BG, N, nh)), _bat_spec((BG, N, 1)),
                 _bat_spec((BG, N * N, 1))]
                + [_rep_spec(c.shape) for c in consts])
    kern = functools.partial(_spectral_conv_kernel, nlayer=L)
    return pl.pallas_call(
        kern,
        out_shape=jax.ShapeDtypeStruct((B, N, H), jnp.float32),
        grid=(B // BG,),
        in_specs=in_specs,
        out_specs=_bat_spec((BG, N, H)),
        compiler_params=pltpu.CompilerParams(
            dimension_semantics=("parallel",), vmem_limit_bytes=VMEM_LIMIT),
    )(x0, u, ne_t, nmask, eidx, *consts)


# ----------------------------------------------------------------------------
# Masked average pooling + readout Linear (whole batch in one step, exact divide)
# ----------------------------------------------------------------------------

def _pool_readout_kernel(x_ref, m_ref, w_ref, b_ref, o_ref):
    x = x_ref[...]                                       # (B, N, H)
    m = m_ref[...]                                       # (B, N, 1)
    pooled = jnp.sum(x * m, axis=1)                      # (B, H)
    cnt = jnp.maximum(jnp.sum(m, axis=1), 1.0)           # /0 guard
    pooled = pooled / cnt                                # exact divide (model output)
    o_ref[...] = jnp.dot(pooled, w_ref[...],
                         preferred_element_type=jnp.float32) + b_ref[...]


def pool_readout_pallas(x, nmask, w, b):
    B, N, H = x.shape
    nclass = w.shape[1]
    return pl.pallas_call(
        _pool_readout_kernel,
        out_shape=jax.ShapeDtypeStruct((B, nclass), jnp.float32),
        grid=(1,),
        in_specs=[pl.BlockSpec((B, N, H), lambda i: (0, 0, 0)),
                  pl.BlockSpec((B, N, 1), lambda i: (0, 0, 0)),
                  pl.BlockSpec((H, nclass), lambda i: (0, 0)),
                  pl.BlockSpec((1, nclass), lambda i: (0, 0))],
        out_specs=pl.BlockSpec((B, nclass), lambda i: (0, 0)),
        compiler_params=pltpu.CompilerParams(
            dimension_semantics=("arbitrary",), vmem_limit_bytes=VMEM_LIMIT),
    )(x, nmask, w, b.reshape(1, nclass))


# ----------------------------------------------------------------------------
# JAX glue (tiny elementwise / lookup / trace-time weight prep only)
# ----------------------------------------------------------------------------

def specformer_forward(params, e, u, node_feat, edge_feat, length):
    B, N = e.shape
    H = params['hidden']
    nheads = params['nheads']
    node_mask = (jnp.arange(N)[None, :] < length[:, None]).astype(jnp.float32)
    kmask = node_mask[:, None, :]            # (B, 1, N) attention key mask
    nmask = node_mask[:, :, None]            # (B, N, 1) source / pool mask

    # sine eigenvalue encoding features (tiny elementwise, XLA glue)
    ee = e * 100.0
    div = jnp.exp(jnp.arange(0, H, 2, dtype=jnp.float32)
                  * (-math.log(10000.0) / H))
    pe = ee[..., None] * div
    eeig = jnp.concatenate([e[..., None], jnp.sin(pe), jnp.cos(pe)], axis=-1)

    # fused transformer encoder over eigenvalues
    ne_t, attn_flat = encoder_pallas(eeig, kmask, params)
    new_e = ne_t.transpose(0, 2, 1)                                  # (B, nheads, N)
    attn = attn_flat.reshape(B, N, nheads, N).transpose(0, 2, 1, 3)  # (B, nheads, N, N)

    # atom embedding lookup stays in XLA glue (tiny gather)
    x0 = jnp.take(params['atom_emb'], node_feat, axis=0)             # (B, N, H)
    eidx = edge_feat.reshape(B, N * N, 1).astype(jnp.int32)

    # stack conv weights, fold BatchNorm (eval), pre-project bond table (trace time)
    eps = 1e-5
    convs = params['convs']
    preW = jnp.stack([cp['pre_w'] for cp in convs])                  # (L, H, H)
    preB = jnp.stack([cp['pre_b'] for cp in convs])[:, None, :]      # (L, 1, H)
    bondW = jnp.stack([params['bond_emb'] @ cp['pre_w'] for cp in convs])   # (L, nb, H)
    w1s, b1s, w2s, b2s = [], [], [], []
    for cp in convs:
        s1 = cp['bn1_g'] * lax.rsqrt(cp['bn1_v'] + eps)
        w1s.append(cp['w1'] * s1[None, :])
        b1s.append(cp['b1'] * s1 + (cp['bn1_b'] - cp['bn1_m'] * s1))
        s2 = cp['bn2_g'] * lax.rsqrt(cp['bn2_v'] + eps)
        w2s.append(cp['w2'] * s2[None, :])
        b2s.append(cp['b2'] * s2 + (cp['bn2_b'] - cp['bn2_m'] * s2))
    stk = dict(preW=preW, preB=preB, bondW=bondW,
               w1=jnp.stack(w1s), b1=jnp.stack(b1s)[:, None, :],
               w2=jnp.stack(w2s), b2=jnp.stack(b2s)[:, None, :])

    # fused spectral bases + filter encoder + all conv layers (fb never hits HBM)
    x = spectral_conv_pallas(x0, u, ne_t, nmask, eidx, params, stk)

    # masked average pooling + readout Linear
    h = pool_readout_pallas(x, nmask, params['lin_w'], params['lin_b'])
    return h, new_e, attn


# ----------------------------------------------------------------------------
# deterministic parameter initialization (synthetic weights, no checkpoint)
# ----------------------------------------------------------------------------

def init_params(key, hidden, nheads, nclass, nlayer):
    H = hidden
    keys = iter(jax.random.split(key, 256))

    def w(shape, scale=0.1):
        return jax.random.normal(next(keys), shape, jnp.float32) * scale

    p = dict(hidden=H, nheads=nheads)
    p['atom_emb'] = w((40, H))
    p['bond_emb'] = w((10, H)).at[0].set(0.0)          # padding_idx=0
    p['eig_w'], p['eig_b'] = w((H + 1, H)), w((H,))
    p['mha_norm_g'], p['mha_norm_b'] = 1.0 + w((H,)), w((H,))
    p['ffn_norm_g'], p['ffn_norm_b'] = 1.0 + w((H,)), w((H,))
    p['mha_in_w'], p['mha_in_b'] = w((H, 3 * H)), w((3 * H,))
    p['mha_out_w'], p['mha_out_b'] = w((H, H)), w((H,))
    p['ffn_w1'], p['ffn_b1'] = w((H, H)), w((H,))
    p['ffn_w2'], p['ffn_b2'] = w((H, H)), w((H,))
    p['dec_w'], p['dec_b'] = w((H, nheads)), w((nheads,))
    p['filt_w1'], p['filt_b1'] = w((nheads + 1, H)), w((H,))
    p['filt_w2'], p['filt_b2'] = w((H, H)), w((H,))
    convs = []
    for _ in range(nlayer):
        convs.append(dict(
            pre_w=w((H, H)), pre_b=w((H,)),
            w1=w((H, H)), b1=w((H,)),
            bn1_g=1.0 + w((H,)), bn1_b=w((H,)), bn1_m=w((H,)),
            bn1_v=1.0 + jnp.abs(w((H,))),
            w2=w((H, H)), b2=w((H,)),
            bn2_g=1.0 + w((H,)), bn2_b=w((H,)), bn2_m=w((H,)),
            bn2_v=1.0 + jnp.abs(w((H,))),
        ))
    p['convs'] = convs
    p['lin_w'], p['lin_b'] = w((H, nclass)), w((nclass,))
    return p


# ----------------------------------------------------------------------------

if __name__ == "__main__":
    B, N, H, NHEADS, NCLASS, NLAYER = 2, 8, 32, 4, 1, 2
    key = jax.random.PRNGKey(0)
    kp, ke, ku, kn, kb = jax.random.split(key, 5)

    params = init_params(kp, H, NHEADS, NCLASS, NLAYER)

    length = jnp.array([8, 5], dtype=jnp.int32)
    node_mask = (jnp.arange(N)[None, :] < length[:, None]).astype(jnp.float32)
    pair_mask = node_mask[:, :, None] * node_mask[:, None, :]

    e = jax.random.uniform(ke, (B, N), jnp.float32, 0.0, 2.0) * node_mask
    u = jax.random.normal(ku, (B, N, N), jnp.float32) * pair_mask
    node_feat = jax.random.randint(kn, (B, N), 0, 40).astype(jnp.int32)
    edge_feat = (jax.random.randint(kb, (B, N, N), 0, 10)
                 * pair_mask.astype(jnp.int32)).astype(jnp.int32)

    # TODO(synk): DGL graph object is replaced by the dense masked layout above
    # (ZINC uses dense per-molecule graphs so sum(len^2) edges == dense block).
    h, new_e, attn = specformer_forward(params, e, u, node_feat, edge_feat, length)
    jax.block_until_ready((h, new_e, attn))

    assert h.shape == (B, NCLASS)
    assert new_e.shape == (B, NHEADS, N)
    assert attn.shape == (B, NHEADS, N, N)
    print("KERNEL_OK")
</pallas_src>

<mosaic_0001>
module attributes {stable_mosaic.version = 11 : i64} {
  func.func @_encoder_kernel(%arg0: i32, %arg1: memref<2x8x33xf32, #tpu.memory_space<vmem>>, %arg2: memref<2x1x8xf32, #tpu.memory_space<vmem>>, %arg3: memref<33x32xf32, #tpu.memory_space<vmem>>, %arg4: memref<1x32xf32, #tpu.memory_space<vmem>>, %arg5: memref<1x32xf32, #tpu.memory_space<vmem>>, %arg6: memref<1x32xf32, #tpu.memory_space<vmem>>, %arg7: memref<32x96xf32, #tpu.memory_space<vmem>>, %arg8: memref<1x96xf32, #tpu.memory_space<vmem>>, %arg9: memref<32x32xf32, #tpu.memory_space<vmem>>, %arg10: memref<1x32xf32, #tpu.memory_space<vmem>>, %arg11: memref<1x32xf32, #tpu.memory_space<vmem>>, %arg12: memref<1x32xf32, #tpu.memory_space<vmem>>, %arg13: memref<32x32xf32, #tpu.memory_space<vmem>>, %arg14: memref<1x32xf32, #tpu.memory_space<vmem>>, %arg15: memref<32x32xf32, #tpu.memory_space<vmem>>, %arg16: memref<1x32xf32, #tpu.memory_space<vmem>>, %arg17: memref<32x4xf32, #tpu.memory_space<vmem>>, %arg18: memref<1x4xf32, #tpu.memory_space<vmem>>, %arg19: memref<2x8x4xf32, #tpu.memory_space<vmem>>, %arg20: memref<2x8x32xf32, #tpu.memory_space<vmem>>) attributes {dimension_semantics = [#tpu.dimension_semantics<parallel>], iteration_bounds = array<i64: 1>, scalar_prefetch = 0 : i64, scratch_operands = 0 : i64, tpu.core_type = #tpu.core_type<tc>, window_params = [{transform_indices = @transform_0, window_bounds = array<i64: 2, 8, 33>}, {transform_indices = @transform_1, window_bounds = array<i64: 2, 1, 8>}, {pipeline_mode = #tpu.pipeline_mode<synchronous>, transform_indices = @transform_2, window_bounds = array<i64: 33, 32>}, {pipeline_mode = #tpu.pipeline_mode<synchronous>, transform_indices = @transform_3, window_bounds = array<i64: 1, 32>}, {pipeline_mode = #tpu.pipeline_mode<synchronous>, transform_indices = @transform_4, window_bounds = array<i64: 1, 32>}, {pipeline_mode = #tpu.pipeline_mode<synchronous>, transform_indices = @transform_5, window_bounds = array<i64: 1, 32>}, {pipeline_mode = #tpu.pipeline_mode<synchronous>, transform_indices = @transform_6, window_bounds = array<i64: 32, 96>}, {pipeline_mode = #tpu.pipeline_mode<synchronous>, transform_indices = @transform_7, window_bounds = array<i64: 1, 96>}, {pipeline_mode = #tpu.pipeline_mode<synchronous>, transform_indices = @transform_8, window_bounds = array<i64: 32, 32>}, {pipeline_mode = #tpu.pipeline_mode<synchronous>, transform_indices = @transform_9, window_bounds = array<i64: 1, 32>}, {pipeline_mode = #tpu.pipeline_mode<synchronous>, transform_indices = @transform_10, window_bounds = array<i64: 1, 32>}, {pipeline_mode = #tpu.pipeline_mode<synchronous>, transform_indices = @transform_11, window_bounds = array<i64: 1, 32>}, {pipeline_mode = #tpu.pipeline_mode<synchronous>, transform_indices = @transform_12, window_bounds = array<i64: 32, 32>}, {pipeline_mode = #tpu.pipeline_mode<synchronous>, transform_indices = @transform_13, window_bounds = array<i64: 1, 32>}, {pipeline_mode = #tpu.pipeline_mode<synchronous>, transform_indices = @transform_14, window_bounds = array<i64: 32, 32>}, {pipeline_mode = #tpu.pipeline_mode<synchronous>, transform_indices = @transform_15, window_bounds = array<i64: 1, 32>}, {pipeline_mode = #tpu.pipeline_mode<synchronous>, transform_indices = @transform_16, window_bounds = array<i64: 32, 4>}, {pipeline_mode = #tpu.pipeline_mode<synchronous>, transform_indices = @transform_17, window_bounds = array<i64: 1, 4>}, {transform_indices = @transform_18, window_bounds = array<i64: 2, 8, 4>}, {transform_indices = @transform_19, window_bounds = array<i64: 2, 8, 32>}]} {
    %c0 = arith.constant 0 : index
    %c0_0 = arith.constant 0 : index
    %c0_1 = arith.constant 0 : index
    %0 = vector.load %arg1[%c0, %c0_0, %c0_1] : memref<2x8x33xf32, #tpu.memory_space<vmem>>, vector<2x8x33xf32>
    %c0_2 = arith.constant 0 : index
    %c0_3 = arith.constant 0 : index
    %c0_4 = arith.constant 0 : index
    %1 = vector.load %arg2[%c0_2, %c0_3, %c0_4] : memref<2x1x8xf32, #tpu.memory_space<vmem>>, vector<2x1x8xf32>
    %2 = vector.shape_cast %0 : vector<2x8x33xf32> to vector<16x33xf32>
    %3 = arith.truncf %2 : vector<16x33xf32> to vector<16x33xbf16>
    %c0_5 = arith.constant 0 : index
    %c0_6 = arith.constant 0 : index
    %4 = vector.load %arg3[%c0_5, %c0_6] : memref<33x32xf32, #tpu.memory_space<vmem>>, vector<33x32xf32>
    %5 = arith.truncf %4 : vector<33x32xf32> to vector<33x32xbf16>
    %cst = arith.constant dense<0.000000e+00> : vector<16x32xf32>
    %6 = tpu.matmul %3, %5, %cst {dimension_numbers = #tpu.dot_dimension_numbers<[1], [0], [0], [1], [0, 0, 1, 1], [], []>} : vector<16x33xbf16>, vector<33x32xbf16>, vector<16x32xf32> -> vector<16x32xf32>
    %c0_7 = arith.constant 0 : index
    %c0_8 = arith.constant 0 : index
    %7 = vector.load %arg4[%c0_7, %c0_8] : memref<1x32xf32, #tpu.memory_space<vmem>>, vector<1x32xf32>
    %8 = vector.broadcast %7 : vector<1x32xf32> to vector<16x32xf32>
    %9 = arith.addf %6, %8 : vector<16x32xf32>
    %10 = vector.shape_cast %9 : vector<16x32xf32> to vector<2x8x32xf32>
    %c0_9 = arith.constant 0 : index
    %c0_10 = arith.constant 0 : index
    %11 = vector.load %arg5[%c0_9, %c0_10] : memref<1x32xf32, #tpu.memory_space<vmem>>, vector<1x32xf32>
    %c0_11 = arith.constant 0 : index
    %c0_12 = arith.constant 0 : index
    %12 = vector.load %arg6[%c0_11, %c0_12] : memref<1x32xf32, #tpu.memory_space<vmem>>, vector<1x32xf32>
    %cst_13 = arith.constant dense<0.000000e+00> : vector<2x8xf32>
    %13 = vector.multi_reduction <add>, %10, %cst_13 [2] : vector<2x8x32xf32> to vector<2x8xf32>
    %14 = vector.shape_cast %13 : vector<2x8xf32> to vector<2x8x1xf32>
    %cst_14 = arith.constant 3.200000e+01 : f32
    %15 = vector.broadcast %cst_14 : f32 to vector<2x8x1xf32>
    %16 = arith.divf %14, %15 : vector<2x8x1xf32>
    %17 = vector.broadcast %16 : vector<2x8x1xf32> to vector<2x8x32xf32>
    %18 = arith.subf %10, %17 : vector<2x8x32xf32>
    %19 = arith.mulf %18, %18 : vector<2x8x32xf32>
    %cst_15 = arith.constant dense<0.000000e+00> : vector<2x8xf32>
    %20 = vector.multi_reduction <add>, %19, %cst_15 [2] : vector<2x8x32xf32> to vector<2x8xf32>
    %21 = vector.shape_cast %20 : vector<2x8xf32> to vector<2x8x1xf32>
    %cst_16 = arith.constant 3.200000e+01 : f32
    %22 = vector.broadcast %cst_16 : f32 to vector<2x8x1xf32>
    %23 = arith.divf %21, %22 : vector<2x8x1xf32>
    %24 = vector.broadcast %16 : vector<2x8x1xf32> to vector<2x8x32xf32>
    %25 = arith.subf %10, %24 : vector<2x8x32xf32>
    %cst_17 = arith.constant 9.99999974E-6 : f32
    %26 = vector.broadcast %cst_17 : f32 to vector<2x8x1xf32>
    %27 = arith.addf %23, %26 : vector<2x8x1xf32>
    %28 = math.rsqrt %27 : vector<2x8x1xf32>
    %29 = vector.broadcast %28 : vector<2x8x1xf32> to vector<2x8x32xf32>
    %30 = arith.mulf %25, %29 : vector<2x8x32xf32>
    %31 = vector.shape_cast %11 : vector<1x32xf32> to vector<1x1x32xf32>
    %32 = vector.broadcast %31 : vector<1x1x32xf32> to vector<2x8x32xf32>
    %33 = arith.mulf %30, %32 : vector<2x8x32xf32>
    %34 = vector.shape_cast %12 : vector<1x32xf32> to vector<1x1x32xf32>
    %35 = vector.broadcast %34 : vector<1x1x32xf32> to vector<2x8x32xf32>
    %36 = arith.addf %33, %35 : vector<2x8x32xf32>
    %37 = vector.shape_cast %36 : vector<2x8x32xf32> to vector<16x32xf32>
    %38 = arith.truncf %37 : vector<16x32xf32> to vector<16x32xbf16>
    %c0_18 = arith.constant 0 : index
    %c0_19 = arith.constant 0 : index
    %39 = vector.load %arg7[%c0_18, %c0_19] : memref<32x96xf32, #tpu.memory_space<vmem>>, vector<32x96xf32>
    %40 = arith.truncf %39 : vector<32x96xf32> to vector<32x96xbf16>
    %cst_20 = arith.constant dense<0.000000e+00> : vector<16x96xf32>
    %41 = tpu.matmul %38, %40, %cst_20 {dimension_numbers = #tpu.dot_dimension_numbers<[1], [0], [0], [1], [0, 0, 1, 1], [], []>} : vector<16x32xbf16>, vector<32x96xbf16>, vector<16x96xf32> -> vector<16x96xf32>
    %c0_21 = arith.constant 0 : index
    %c0_22 = arith.constant 0 : index
    %42 = vector.load %arg8[%c0_21, %c0_22] : memref<1x96xf32, #tpu.memory_space<vmem>>, vector<1x96xf32>
    %43 = vector.broadcast %42 : vector<1x96xf32> to vector<16x96xf32>
    %44 = arith.addf %41, %43 : vector<16x96xf32>
    %45 = vector.shape_cast %44 : vector<16x96xf32> to vector<2x8x96xf32>
    %cst_23 = arith.constant 0.000000e+00 : f32
    %46 = vector.broadcast %cst_23 : f32 to vector<16x32xf32>
    %47 = vector.extract_strided_slice %45 {offsets = [0, 0, 0], sizes = [2, 8, 8], strides = [1, 1, 1]} : vector<2x8x96xf32> to vector<2x8x8xf32>
    %48 = vector.extract_strided_slice %45 {offsets = [0, 0, 32], sizes = [2, 8, 8], strides = [1, 1, 1]} : vector<2x8x96xf32> to vector<2x8x8xf32>
    %49 = vector.extract_strided_slice %45 {offsets = [0, 0, 64], sizes = [2, 8, 8], strides = [1, 1, 1]} : vector<2x8x96xf32> to vector<2x8x8xf32>
    %50 = arith.truncf %47 : vector<2x8x8xf32> to vector<2x8x8xbf16>
    %51 = arith.truncf %48 : vector<2x8x8xf32> to vector<2x8x8xbf16>
    "tpu.trace_start"() <{level = 10 : i32, message = "bqd,bkd->bqk"}> : () -> ()
    %cst_24 = arith.constant dense<0.000000e+00> : vector<2x8x8xf32>
    %52 = tpu.matmul %50, %51, %cst_24 {dimension_numbers = #tpu.dot_dimension_numbers<[2], [2], [1], [1], [0, 0, 0, 1, 1, 1], [0], [0]>} : vector<2x8x8xbf16>, vector<2x8x8xbf16>, vector<2x8x8xf32> -> vector<2x8x8xf32>
    "tpu.trace_stop"() : () -> ()
    %cst_25 = arith.constant 0.353553385 : f32
    %53 = vector.broadcast %cst_25 : f32 to vector<2x8x8xf32>
    %54 = arith.mulf %52, %53 : vector<2x8x8xf32>
    %cst_26 = arith.constant 0.000000e+00 : f32
    %55 = vector.broadcast %cst_26 : f32 to vector<2x1x8xf32>
    %56 = arith.cmpf ogt, %1, %55 : vector<2x1x8xf32>
    %cst_27 = arith.constant -1.000000e+30 : f32
    %57 = vector.shape_cast %56 : vector<2x1x8xi1> to vector<2x1x8xi1>
    %58 = vector.broadcast %57 : vector<2x1x8xi1> to vector<2x8x8xi1>
    %59 = vector.broadcast %cst_27 : f32 to vector<2x8x8xf32>
    %60 = arith.select %58, %54, %59 : vector<2x8x8xi1>, vector<2x8x8xf32>
    %cst_28 = arith.constant dense<0xFF800000> : vector<2x8xf32>
    %61 = vector.multi_reduction <maximumf>, %60, %cst_28 [2] : vector<2x8x8xf32> to vector<2x8xf32>
    %62 = vector.shape_cast %61 : vector<2x8xf32> to vector<2x8x1xf32>
    %63 = vector.broadcast %62 : vector<2x8x1xf32> to vector<2x8x8xf32>
    %64 = arith.subf %60, %63 : vector<2x8x8xf32>
    %65 = math.exp %64 : vector<2x8x8xf32>
    %cst_29 = arith.constant dense<0.000000e+00> : vector<2x8xf32>
    %66 = vector.multi_reduction <add>, %65, %cst_29 [2] : vector<2x8x8xf32> to vector<2x8xf32>
    %67 = vector.shape_cast %66 : vector<2x8xf32> to vector<2x8x1xf32>
    %68 = vector.broadcast %67 : vector<2x8x1xf32> to vector<2x8x8xf32>
    %69 = arith.divf %65, %68 : vector<2x8x8xf32>
    %c0_30 = arith.constant 0 : index
    %c0_31 = arith.constant 0 : index
    %c0_32 = arith.constant 0 : index
    %70 = vector.load %arg20[%c0_30, %c0_31, %c0_32] : memref<2x8x32xf32, #tpu.memory_space<vmem>>, vector<2x8x8xf32>
    tpu.vector_store %arg20[%c0_30, %c0_31, %c0_32], %69 {strides = array<i32>} : memref<2x8x32xf32, #tpu.memory_space<vmem>>, vector<2x8x8xf32>,
    %71 = arith.truncf %69 : vector<2x8x8xf32> to vector<2x8x8xbf16>
    %72 = arith.truncf %49 : vector<2x8x8xf32> to vector<2x8x8xbf16>
    "tpu.trace_start"() <{level = 10 : i32, message = "bqk,bkd->bqd"}> : () -> ()
    %cst_33 = arith.constant dense<0.000000e+00> : vector<2x8x8xf32>
    %73 = tpu.matmul %71, %72, %cst_33 {dimension_numbers = #tpu.dot_dimension_numbers<[2], [1], [1], [2], [0, 0, 0, 1, 1, 2], [0], [0]>} : vector<2x8x8xbf16>, vector<2x8x8xbf16>, vector<2x8x8xf32> -> vector<2x8x8xf32>
    "tpu.trace_stop"() : () -> ()
    %74 = vector.shape_cast %73 : vector<2x8x8xf32> to vector<16x8xf32>
    %75 = arith.truncf %74 : vector<16x8xf32> to vector<16x8xbf16>
    %c0_34 = arith.constant 0 : index
    %c0_35 = arith.constant 0 : index
    %76 = vector.load %arg9[%c0_34, %c0_35] : memref<32x32xf32, #tpu.memory_space<vmem>>, vector<8x32xf32>
    %77 = arith.truncf %76 : vector<8x32xf32> to vector<8x32xbf16>
    %cst_36 = arith.constant dense<0.000000e+00> : vector<16x32xf32>
    %78 = tpu.matmul %75, %77, %cst_36 {dimension_numbers = #tpu.dot_dimension_numbers<[1], [0], [0], [1], [0, 0, 1, 1], [], []>} : vector<16x8xbf16>, vector<8x32xbf16>, vector<16x32xf32> -> vector<16x32xf32>
    %79 = arith.addf %46, %78 : vector<16x32xf32>
    %80 = vector.extract_strided_slice %45 {offsets = [0, 0, 8], sizes = [2, 8, 8], strides = [1, 1, 1]} : vector<2x8x96xf32> to vector<2x8x8xf32>
    %81 = vector.extract_strided_slice %45 {offsets = [0, 0, 40], sizes = [2, 8, 8], strides = [1, 1, 1]} : vector<2x8x96xf32> to vector<2x8x8xf32>
    %82 = vector.extract_strided_slice %45 {offsets = [0, 0, 72], sizes = [2, 8, 8], strides = [1, 1, 1]} : vector<2x8x96xf32> to vector<2x8x8xf32>
    %83 = arith.truncf %80 : vector<2x8x8xf32> to vector<2x8x8xbf16>
    %84 = arith.truncf %81 : vector<2x8x8xf32> to vector<2x8x8xbf16>
    "tpu.trace_start"() <{level = 10 : i32, message = "bqd,bkd->bqk"}> : () -> ()
    %cst_37 = arith.constant dense<0.000000e+00> : vector<2x8x8xf32>
    %85 = tpu.matmul %83, %84, %cst_37 {dimension_numbers = #tpu.dot_dimension_numbers<[2], [2], [1], [1], [0, 0, 0, 1, 1, 1], [0], [0]>} : vector<2x8x8xbf16>, vector<2x8x8xbf16>, vector<2x8x8xf32> -> vector<2x8x8xf32>
    "tpu.trace_stop"() : () -> ()
    %cst_38 = arith.constant 0.353553385 : f32
    %86 = vector.broadcast %cst_38 : f32 to vector<2x8x8xf32>
    %87 = arith.mulf %85, %86 : vector<2x8x8xf32>
    %cst_39 = arith.constant 0.000000e+00 : f32
    %88 = vector.broadcast %cst_39 : f32 to vector<2x1x8xf32>
    %89 = arith.cmpf ogt, %1, %88 : vector<2x1x8xf32>
    %cst_40 = arith.constant -1.000000e+30 : f32
    %90 = vector.shape_cast %89 : vector<2x1x8xi1> to vector<2x1x8xi1>
    %91 = vector.broadcast %90 : vector<2x1x8xi1> to vector<2x8x8xi1>
    %92 = vector.broadcast %cst_40 : f32 to vector<2x8x8xf32>
    %93 = arith.select %91, %87, %92 : vector<2x8x8xi1>, vector<2x8x8xf32>
    %cst_41 = arith.constant dense<0xFF800000> : vector<2x8xf32>
    %94 = vector.multi_reduction <maximumf>, %93, %cst_41 [2] : vector<2x8x8xf32> to vector<2x8xf32>
    %95 = vector.shape_cast %94 : vector<2x8xf32> to vector<2x8x1xf32>
    %96 = vector.broadcast %95 : vector<2x8x1xf32> to vector<2x8x8xf32>
    %97 = arith.subf %93, %96 : vector<2x8x8xf32>
    %98 = math.exp %97 : vector<2x8x8xf32>
    %cst_42 = arith.constant dense<0.000000e+00> : vector<2x8xf32>
    %99 = vector.multi_reduction <add>, %98, %cst_42 [2] : vector<2x8x8xf32> to vector<2x8xf32>
    %100 = vector.shape_cast %99 : vector<2x8xf32> to vector<2x8x1xf32>
    %101 = vector.broadcast %100 : vector<2x8x1xf32> to vector<2x8x8xf32>
    %102 = arith.divf %98, %101 : vector<2x8x8xf32>
    %c0_43 = arith.constant 0 : index
    %c0_44 = arith.constant 0 : index
    %c8 = arith.constant 8 : index
    %103 = vector.load %arg20[%c0_43, %c0_44, %c8] : memref<2x8x32xf32, #tpu.memory_space<vmem>>, vector<2x8x8xf32>
    tpu.vector_store %arg20[%c0_43, %c0_44, %c8], %102 {strides = array<i32>} : memref<2x8x32xf32, #tpu.memory_space<vmem>>, vector<2x8x8xf32>,
    %104 = arith.truncf %102 : vector<2x8x8xf32> to vector<2x8x8xbf16>
    %105 = arith.truncf %82 : vector<2x8x8xf32> to vector<2x8x8xbf16>
    "tpu.trace_start"() <{level = 10 : i32, message = "bqk,bkd->bqd"}> : () -> ()
    %cst_45 = arith.constant dense<0.000000e+00> : vector<2x8x8xf32>
    %106 = tpu.matmul %104, %105, %cst_45 {dimension_numbers = #tpu.dot_dimension_numbers<[2], [1], [1], [2], [0, 0, 0, 1, 1, 2], [0], [0]>} : vector<2x8x8xbf16>, vector<2x8x8xbf16>, vector<2x8x8xf32> -> vector<2x8x8xf32>
    "tpu.trace_stop"() : () -> ()
    %107 = vector.shape_cast %106 : vector<2x8x8xf32> to vector<16x8xf32>
    %108 = arith.truncf %107 : vector<16x8xf32> to vector<16x8xbf16>
    %c8_46 = arith.constant 8 : index
    %c0_47 = arith.constant 0 : index
    %109 = vector.load %arg9[%c8_46, %c0_47] : memref<32x32xf32, #tpu.memory_space<vmem>>, vector<8x32xf32>
    %110 = arith.truncf %109 : vector<8x32xf32> to vector<8x32xbf16>
    %cst_48 = arith.constant dense<0.000000e+00> : vector<16x32xf32>
    %111 = tpu.matmul %108, %110, %cst_48 {dimension_numbers = #tpu.dot_dimension_numbers<[1], [0], [0], [1], [0, 0, 1, 1], [], []>} : vector<16x8xbf16>, vector<8x32xbf16>, vector<16x32xf32> -> vector<16x32xf32>
    %112 = arith.addf %79, %111 : vector<16x32xf32>
    %113 = vector.extract_strided_slice %45 {offsets = [0, 0, 16], sizes = [2, 8, 8], strides = [1, 1, 1]} : vector<2x8x96xf32> to vector<2x8x8xf32>
    %114 = vector.extract_strided_slice %45 {offsets = [0, 0, 48], sizes = [2, 8, 8], strides = [1, 1, 1]} : vector<2x8x96xf32> to vector<2x8x8xf32>
    %115 = vector.extract_strided_slice %45 {offsets = [0, 0, 80], sizes = [2, 8, 8], strides = [1, 1, 1]} : vector<2x8x96xf32> to vector<2x8x8xf32>
    %116 = arith.truncf %113 : vector<2x8x8xf32> to vector<2x8x8xbf16>
    %117 = arith.truncf %114 : vector<2x8x8xf32> to vector<2x8x8xbf16>
    "tpu.trace_start"() <{level = 10 : i32, message = "bqd,bkd->bqk"}> : () -> ()
    %cst_49 = arith.constant dense<0.000000e+00> : vector<2x8x8xf32>
    %118 = tpu.matmul %116, %117, %cst_49 {dimension_numbers = #tpu.dot_dimension_numbers<[2], [2], [1], [1], [0, 0, 0, 1, 1, 1], [0], [0]>} : vector<2x8x8xbf16>, vector<2x8x8xbf16>, vector<2x8x8xf32> -> vector<2x8x8xf32>
    "tpu.trace_stop"() : () -> ()
    %cst_50 = arith.constant 0.353553385 : f32
    %119 = vector.broadcast %cst_50 : f32 to vector<2x8x8xf32>
    %120 = arith.mulf %118, %119 : vector<2x8x8xf32>
    %cst_51 = arith.constant 0.000000e+00 : f32
    %121 = vector.broadcast %cst_51 : f32 to vector<2x1x8xf32>
    %122 = arith.cmpf ogt, %1, %121 : vector<2x1x8xf32>
    %cst_52 = arith.constant -1.000000e+30 : f32
    %123 = vector.shape_cast %122 : vector<2x1x8xi1> to vector<2x1x8xi1>
    %124 = vector.broadcast %123 : vector<2x1x8xi1> to vector<2x8x8xi1>
    %125 = vector.broadcast %cst_52 : f32 to vector<2x8x8xf32>
    %126 = arith.select %124, %120, %125 : vector<2x8x8xi1>, vector<2x8x8xf32>
    %cst_53 = arith.constant dense<0xFF800000> : vector<2x8xf32>
    %127 = vector.multi_reduction <maximumf>, %126, %cst_53 [2] : vector<2x8x8xf32> to vector<2x8xf32>
    %128 = vector.shape_cast %127 : vector<2x8xf32> to vector<2x8x1xf32>
    %129 = vector.broadcast %128 : vector<2x8x1xf32> to vector<2x8x8xf32>
    %130 = arith.subf %126, %129 : vector<2x8x8xf32>
    %131 = math.exp %130 : vector<2x8x8xf32>
    %cst_54 = arith.constant dense<0.000000e+00> : vector<2x8xf32>
    %132 = vector.multi_reduction <add>, %131, %cst_54 [2] : vector<2x8x8xf32> to vector<2x8xf32>
    %133 = vector.shape_cast %132 : vector<2x8xf32> to vector<2x8x1xf32>
    %134 = vector.broadcast %133 : vector<2x8x1xf32> to vector<2x8x8xf32>
    %135 = arith.divf %131, %134 : vector<2x8x8xf32>
    %c0_55 = arith.constant 0 : index
    %c0_56 = arith.constant 0 : index
    %c16 = arith.constant 16 : index
    %136 = vector.load %arg20[%c0_55, %c0_56, %c16] : memref<2x8x32xf32, #tpu.memory_space<vmem>>, vector<2x8x8xf32>
    tpu.vector_store %arg20[%c0_55, %c0_56, %c16], %135 {strides = array<i32>} : memref<2x8x32xf32, #tpu.memory_space<vmem>>, vector<2x8x8xf32>,
    %137 = arith.truncf %135 : vector<2x8x8xf32> to vector<2x8x8xbf16>
    %138 = arith.truncf %115 : vector<2x8x8xf32> to vector<2x8x8xbf16>
    "tpu.trace_start"() <{level = 10 : i32, message = "bqk,bkd->bqd"}> : () -> ()
    %cst_57 = arith.constant dense<0.000000e+00> : vector<2x8x8xf32>
    %139 = tpu.matmul %137, %138, %cst_57 {dimension_numbers = #tpu.dot_dimension_numbers<[2], [1], [1], [2], [0, 0, 0, 1, 1, 2], [0], [0]>} : vector<2x8x8xbf16>, vector<2x8x8xbf16>, vector<2x8x8xf32> -> vector<2x8x8xf32>
    "tpu.trace_stop"() : () -> ()
    %140 = vector.shape_cast %139 : vector<2x8x8xf32> to vector<16x8xf32>
    %141 = arith.truncf %140 : vector<16x8xf32> to vector<16x8xbf16>
    %c16_58 = arith.constant 16 : index
    %c0_59 = arith.constant 0 : index
    %142 = vector.load %arg9[%c16_58, %c0_59] : memref<32x32xf32, #tpu.memory_space<vmem>>, vector<8x32xf32>
    %143 = arith.truncf %142 : vector<8x32xf32> to vector<8x32xbf16>
    %cst_60 = arith.constant dense<0.000000e+00> : vector<16x32xf32>
    %144 = tpu.matmul %141, %143, %cst_60 {dimension_numbers = #tpu.dot_dimension_numbers<[1], [0], [0], [1], [0, 0, 1, 1], [], []>} : vector<16x8xbf16>, vector<8x32xbf16>, vector<16x32xf32> -> vector<16x32xf32>
    %145 = arith.addf %112, %144 : vector<16x32xf32>
    %146 = vector.extract_strided_slice %45 {offsets = [0, 0, 24], sizes = [2, 8, 8], strides = [1, 1, 1]} : vector<2x8x96xf32> to vector<2x8x8xf32>
    %147 = vector.extract_strided_slice %45 {offsets = [0, 0, 56], sizes = [2, 8, 8], strides = [1, 1, 1]} : vector<2x8x96xf32> to vector<2x8x8xf32>
    %148 = vector.extract_strided_slice %45 {offsets = [0, 0, 88], sizes = [2, 8, 8], strides = [1, 1, 1]} : vector<2x8x96xf32> to vector<2x8x8xf32>
    %149 = arith.truncf %146 : vector<2x8x8xf32> to vector<2x8x8xbf16>
    %150 = arith.truncf %147 : vector<2x8x8xf32> to vector<2x8x8xbf16>
    "tpu.trace_start"() <{level = 10 : i32, message = "bqd,bkd->bqk"}> : () -> ()
    %cst_61 = arith.constant dense<0.000000e+00> : vector<2x8x8xf32>
    %151 = tpu.matmul %149, %150, %cst_61 {dimension_numbers = #tpu.dot_dimension_numbers<[2], [2], [1], [1], [0, 0, 0, 1, 1, 1], [0], [0]>} : vector<2x8x8xbf16>, vector<2x8x8xbf16>, vector<2x8x8xf32> -> vector<2x8x8xf32>
    "tpu.trace_stop"() : () -> ()
    %cst_62 = arith.constant 0.353553385 : f32
    %152 = vector.broadcast %cst_62 : f32 to vector<2x8x8xf32>
    %153 = arith.mulf %151, %152 : vector<2x8x8xf32>
    %cst_63 = arith.constant 0.000000e+00 : f32
    %154 = vector.broadcast %cst_63 : f32 to vector<2x1x8xf32>
    %155 = arith.cmpf ogt, %1, %154 : vector<2x1x8xf32>
    %cst_64 = arith.constant -1.000000e+30 : f32
    %156 = vector.shape_cast %155 : vector<2x1x8xi1> to vector<2x1x8xi1>
    %157 = vector.broadcast %156 : vector<2x1x8xi1> to vector<2x8x8xi1>
    %158 = vector.broadcast %cst_64 : f32 to vector<2x8x8xf32>
    %159 = arith.select %157, %153, %158 : vector<2x8x8xi1>, vector<2x8x8xf32>
    %cst_65 = arith.constant dense<0xFF800000> : vector<2x8xf32>
    %160 = vector.multi_reduction <maximumf>, %159, %cst_65 [2] : vector<2x8x8xf32> to vector<2x8xf32>
    %161 = vector.shape_cast %160 : vector<2x8xf32> to vector<2x8x1xf32>
    %162 = vector.broadcast %161 : vector<2x8x1xf32> to vector<2x8x8xf32>
    %163 = arith.subf %159, %162 : vector<2x8x8xf32>
    %164 = math.exp %163 : vector<2x8x8xf32>
    %cst_66 = arith.constant dense<0.000000e+00> : vector<2x8xf32>
    %165 = vector.multi_reduction <add>, %164, %cst_66 [2] : vector<2x8x8xf32> to vector<2x8xf32>
    %166 = vector.shape_cast %165 : vector<2x8xf32> to vector<2x8x1xf32>
    %167 = vector.broadcast %166 : vector<2x8x1xf32> to vector<2x8x8xf32>
    %168 = arith.divf %164, %167 : vector<2x8x8xf32>
    %c0_67 = arith.constant 0 : index
    %c0_68 = arith.constant 0 : index
    %c24 = arith.constant 24 : index
    %169 = vector.load %arg20[%c0_67, %c0_68, %c24] : memref<2x8x32xf32, #tpu.memory_space<vmem>>, vector<2x8x8xf32>
    tpu.vector_store %arg20[%c0_67, %c0_68, %c24], %168 {strides = array<i32>} : memref<2x8x32xf32, #tpu.memory_space<vmem>>, vector<2x8x8xf32>,
    %170 = arith.truncf %168 : vector<2x8x8xf32> to vector<2x8x8xbf16>
    %171 = arith.truncf %148 : vector<2x8x8xf32> to vector<2x8x8xbf16>
    "tpu.trace_start"() <{level = 10 : i32, message = "bqk,bkd->bqd"}> : () -> ()
    %cst_69 = arith.constant dense<0.000000e+00> : vector<2x8x8xf32>
    %172 = tpu.matmul %170, %171, %cst_69 {dimension_numbers = #tpu.dot_dimension_numbers<[2], [1], [1], [2], [0, 0, 0, 1, 1, 2], [0], [0]>} : vector<2x8x8xbf16>, vector<2x8x8xbf16>, vector<2x8x8xf32> -> vector<2x8x8xf32>
    "tpu.trace_stop"() : () -> ()
    %173 = vector.shape_cast %172 : vector<2x8x8xf32> to vector<16x8xf32>
    %174 = arith.truncf %173 : vector<16x8xf32> to vector<16x8xbf16>
    %c24_70 = arith.constant 24 : index
    %c0_71 = arith.constant 0 : index
    %175 = vector.load %arg9[%c24_70, %c0_71] : memref<32x32xf32, #tpu.memory_space<vmem>>, vector<8x32xf32>
    %176 = arith.truncf %175 : vector<8x32xf32> to vector<8x32xbf16>
    %cst_72 = arith.constant dense<0.000000e+00> : vector<16x32xf32>
    %177 = tpu.matmul %174, %176, %cst_72 {dimension_numbers = #tpu.dot_dimension_numbers<[1], [0], [0], [1], [0, 0, 1, 1], [], []>} : vector<16x8xbf16>, vector<8x32xbf16>, vector<16x32xf32> -> vector<16x32xf32>
    %178 = arith.addf %145, %177 : vector<16x32xf32>
    %c0_73 = arith.constant 0 : index
    %c0_74 = arith.constant 0 : index
    %179 = vector.load %arg10[%c0_73, %c0_74] : memref<1x32xf32, #tpu.memory_space<vmem>>, vector<1x32xf32>
    %180 = vector.broadcast %179 : vector<1x32xf32> to vector<16x32xf32>
    %181 = arith.addf %178, %180 : vector<16x32xf32>
    %182 = vector.shape_cast %181 : vector<16x32xf32> to vector<2x8x32xf32>
    %183 = arith.addf %10, %182 : vector<2x8x32xf32>
    %c0_75 = arith.constant 0 : index
    %c0_76 = arith.constant 0 : index
    %184 = vector.load %arg11[%c0_75, %c0_76] : memref<1x32xf32, #tpu.memory_space<vmem>>, vector<1x32xf32>
    %c0_77 = arith.constant 0 : index
    %c0_78 = arith.constant 0 : index
    %185 = vector.load %arg12[%c0_77, %c0_78] : memref<1x32xf32, #tpu.memory_space<vmem>>, vector<1x32xf32>
    %cst_79 = arith.constant dense<0.000000e+00> : vector<2x8xf32>
    %186 = vector.multi_reduction <add>, %183, %cst_79 [2] : vector<2x8x32xf32> to vector<2x8xf32>
    %187 = vector.shape_cast %186 : vector<2x8xf32> to vector<2x8x1xf32>
    %cst_80 = arith.constant 3.200000e+01 : f32
    %188 = vector.broadcast %cst_80 : f32 to vector<2x8x1xf32>
    %189 = arith.divf %187, %188 : vector<2x8x1xf32>
    %190 = vector.broadcast %189 : vector<2x8x1xf32> to vector<2x8x32xf32>
    %191 = arith.subf %183, %190 : vector<2x8x32xf32>
    %192 = arith.mulf %191, %191 : vector<2x8x32xf32>
    %cst_81 = arith.constant dense<0.000000e+00> : vector<2x8xf32>
    %193 = vector.multi_reduction <add>, %192, %cst_81 [2] : vector<2x8x32xf32> to vector<2x8xf32>
    %194 = vector.shape_cast %193 : vector<2x8xf32> to vector<2x8x1xf32>
    %cst_82 = arith.constant 3.200000e+01 : f32
    %195 = vector.broadcast %cst_82 : f32 to vector<2x8x1xf32>
    %196 = arith.divf %194, %195 : vector<2x8x1xf32>
    %197 = vector.broadcast %189 : vector<2x8x1xf32> to vector<2x8x32xf32>
    %198 = arith.subf %183, %197 : vector<2x8x32xf32>
    %cst_83 = arith.constant 9.99999974E-6 : f32
    %199 = vector.broadcast %cst_83 : f32 to vector<2x8x1xf32>
    %200 = arith.addf %196, %199 : vector<2x8x1xf32>
    %201 = math.rsqrt %200 : vector<2x8x1xf32>
    %202 = vector.broadcast %201 : vector<2x8x1xf32> to vector<2x8x32xf32>
    %203 = arith.mulf %198, %202 : vector<2x8x32xf32>
    %204 = vector.shape_cast %184 : vector<1x32xf32> to vector<1x1x32xf32>
    %205 = vector.broadcast %204 : vector<1x1x32xf32> to vector<2x8x32xf32>
    %206 = arith.mulf %203, %205 : vector<2x8x32xf32>
    %207 = vector.shape_cast %185 : vector<1x32xf32> to vector<1x1x32xf32>
    %208 = vector.broadcast %207 : vector<1x1x32xf32> to vector<2x8x32xf32>
    %209 = arith.addf %206, %208 : vector<2x8x32xf32>
    %210 = vector.shape_cast %209 : vector<2x8x32xf32> to vector<16x32xf32>
    %211 = arith.truncf %210 : vector<16x32xf32> to vector<16x32xbf16>
    %c0_84 = arith.constant 0 : index
    %c0_85 = arith.constant 0 : index
    %212 = vector.load %arg13[%c0_84, %c0_85] : memref<32x32xf32, #tpu.memory_space<vmem>>, vector<32x32xf32>
    %213 = arith.truncf %212 : vector<32x32xf32> to vector<32x32xbf16>
    %cst_86 = arith.constant dense<0.000000e+00> : vector<16x32xf32>
    %214 = tpu.matmul %211, %213, %cst_86 {dimension_numbers = #tpu.dot_dimension_numbers<[1], [0], [0], [1], [0, 0, 1, 1], [], []>} : vector<16x32xbf16>, vector<32x32xbf16>, vector<16x32xf32> -> vector<16x32xf32>
    %c0_87 = arith.constant 0 : index
    %c0_88 = arith.constant 0 : index
    %215 = vector.load %arg14[%c0_87, %c0_88] : memref<1x32xf32, #tpu.memory_space<vmem>>, vector<1x32xf32>
    %216 = vector.broadcast %215 : vector<1x32xf32> to vector<16x32xf32>
    %217 = arith.addf %214, %216 : vector<16x32xf32>
    %cst_89 = arith.constant 0.707106769 : f32
    %218 = vector.broadcast %cst_89 : f32 to vector<16x32xf32>
    %219 = arith.mulf %217, %218 : vector<16x32xf32>
    %220 = math.absf %219 : vector<16x32xf32>
    %cst_90 = arith.constant 0.327591091 : f32
    %221 = vector.broadcast %cst_90 : f32 to vector<16x32xf32>
    %222 = arith.mulf %221, %220 : vector<16x32xf32>
    %cst_91 = arith.constant 1.000000e+00 : f32
    %223 = vector.broadcast %cst_91 : f32 to vector<16x32xf32>
    %224 = arith.addf %223, %222 : vector<16x32xf32>
    %cst_92 = arith.constant 1.000000e+00 : f32
    %225 = vector.broadcast %cst_92 : f32 to vector<16x32xf32>
    %226 = arith.divf %225, %224 : vector<16x32xf32>
    %cst_93 = arith.constant 1.06140542 : f32
    %227 = vector.broadcast %cst_93 : f32 to vector<16x32xf32>
    %228 = arith.mulf %226, %227 : vector<16x32xf32>
    %cst_94 = arith.constant -1.45315206 : f32
    %229 = vector.broadcast %cst_94 : f32 to vector<16x32xf32>
    %230 = arith.addf %229, %228 : vector<16x32xf32>
    %231 = arith.mulf %226, %230 : vector<16x32xf32>
    %cst_95 = arith.constant 1.42141378 : f32
    %232 = vector.broadcast %cst_95 : f32 to vector<16x32xf32>
    %233 = arith.addf %232, %231 : vector<16x32xf32>
    %234 = arith.mulf %226, %233 : vector<16x32xf32>
    %cst_96 = arith.constant -0.284496725 : f32
    %235 = vector.broadcast %cst_96 : f32 to vector<16x32xf32>
    %236 = arith.addf %235, %234 : vector<16x32xf32>
    %237 = arith.mulf %226, %236 : vector<16x32xf32>
    %cst_97 = arith.constant 0.254829586 : f32
    %238 = vector.broadcast %cst_97 : f32 to vector<16x32xf32>
    %239 = arith.addf %238, %237 : vector<16x32xf32>
    %240 = arith.mulf %226, %239 : vector<16x32xf32>
    %cst_98 = arith.constant 0.000000e+00 : f32
    %241 = vector.broadcast %cst_98 : f32 to vector<16x32xf32>
    %242 = arith.subf %241, %220 : vector<16x32xf32>
    %243 = arith.mulf %242, %220 : vector<16x32xf32>
    %244 = math.exp %243 : vector<16x32xf32>
    %245 = arith.mulf %240, %244 : vector<16x32xf32>
    %cst_99 = arith.constant 1.000000e+00 : f32
    %246 = vector.broadcast %cst_99 : f32 to vector<16x32xf32>
    %247 = arith.subf %246, %245 : vector<16x32xf32>
    %cst_100 = arith.constant 0.000000e+00 : f32
    %248 = vector.broadcast %cst_100 : f32 to vector<16x32xf32>
    %249 = arith.cmpf olt, %219, %248 : vector<16x32xf32>
    %cst_101 = arith.constant 0.000000e+00 : f32
    %250 = vector.broadcast %cst_101 : f32 to vector<16x32xf32>
    %251 = arith.subf %250, %247 : vector<16x32xf32>
    %252 = arith.select %249, %251, %247 : vector<16x32xi1>, vector<16x32xf32>
    %cst_102 = arith.constant 5.000000e-01 : f32
    %253 = vector.broadcast %cst_102 : f32 to vector<16x32xf32>
    %254 = arith.mulf %253, %217 : vector<16x32xf32>
    %cst_103 = arith.constant 1.000000e+00 : f32
    %255 = vector.broadcast %cst_103 : f32 to vector<16x32xf32>
    %256 = arith.addf %255, %252 : vector<16x32xf32>
    %257 = arith.mulf %254, %256 : vector<16x32xf32>
    %258 = arith.truncf %257 : vector<16x32xf32> to vector<16x32xbf16>
    %c0_104 = arith.constant 0 : index
    %c0_105 = arith.constant 0 : index
    %259 = vector.load %arg15[%c0_104, %c0_105] : memref<32x32xf32, #tpu.memory_space<vmem>>, vector<32x32xf32>
    %260 = arith.truncf %259 : vector<32x32xf32> to vector<32x32xbf16>
    %cst_106 = arith.constant dense<0.000000e+00> : vector<16x32xf32>
    %261 = tpu.matmul %258, %260, %cst_106 {dimension_numbers = #tpu.dot_dimension_numbers<[1], [0], [0], [1], [0, 0, 1, 1], [], []>} : vector<16x32xbf16>, vector<32x32xbf16>, vector<16x32xf32> -> vector<16x32xf32>
    %c0_107 = arith.constant 0 : index
    %c0_108 = arith.constant 0 : index
    %262 = vector.load %arg16[%c0_107, %c0_108] : memref<1x32xf32, #tpu.memory_space<vmem>>, vector<1x32xf32>
    %263 = vector.broadcast %262 : vector<1x32xf32> to vector<16x32xf32>
    %264 = arith.addf %261, %263 : vector<16x32xf32>
    %265 = vector.shape_cast %264 : vector<16x32xf32> to vector<2x8x32xf32>
    %266 = arith.addf %183, %265 : vector<2x8x32xf32>
    %267 = vector.shape_cast %266 : vector<2x8x32xf32> to vector<16x32xf32>
    %268 = arith.truncf %267 : vector<16x32xf32> to vector<16x32xbf16>
    %c0_109 = arith.constant 0 : index
    %c0_110 = arith.constant 0 : index
    %269 = vector.load %arg17[%c0_109, %c0_110] : memref<32x4xf32, #tpu.memory_space<vmem>>, vector<32x4xf32>
    %270 = arith.truncf %269 : vector<32x4xf32> to vector<32x4xbf16>
    %cst_111 = arith.constant dense<0.000000e+00> : vector<16x4xf32>
    %271 = tpu.matmul %268, %270, %cst_111 {dimension_numbers = #tpu.dot_dimension_numbers<[1], [0], [0], [1], [0, 0, 1, 1], [], []>} : vector<16x32xbf16>, vector<32x4xbf16>, vector<16x4xf32> -> vector<16x4xf32>
    %c0_112 = arith.constant 0 : index
    %c0_113 = arith.constant 0 : index
    %272 = vector.load %arg18[%c0_112, %c0_113] : memref<1x4xf32, #tpu.memory_space<vmem>>, vector<1x4xf32>
    %273 = vector.broadcast %272 : vector<1x4xf32> to vector<16x4xf32>
    %274 = arith.addf %271, %273 : vector<16x4xf32>
    %275 = vector.shape_cast %274 : vector<16x4xf32> to vector<2x8x4xf32>
    %c0_114 = arith.constant 0 : index
    %c0_115 = arith.constant 0 : index
    %c0_116 = arith.constant 0 : index
    %276 = vector.load %arg19[%c0_114, %c0_115, %c0_116] : memref<2x8x4xf32, #tpu.memory_space<vmem>>, vector<2x8x4xf32>
    tpu.vector_store %arg19[%c0_114, %c0_115, %c0_116], %275 {strides = array<i32>} : memref<2x8x4xf32, #tpu.memory_space<vmem>>, vector<2x8x4xf32>,
    return
  }
  func.func @transform_0(%arg0: i32) -> (i32, i32, i32) {
    %c0_i32 = arith.constant 0 : i32
    %c0_i32_0 = arith.constant 0 : i32
    %c0_i32_1 = arith.constant 0 : i32
    return %arg0, %c0_i32, %c0_i32_0 : i32, i32, i32
  }
  func.func @transform_1(%arg0: i32) -> (i32, i32, i32) {
    %c0_i32 = arith.constant 0 : i32
    %c0_i32_0 = arith.constant 0 : i32
    %c0_i32_1 = arith.constant 0 : i32
    return %arg0, %c0_i32, %c0_i32_0 : i32, i32, i32
  }
  func.func @transform_2(%arg0: i32) -> (i32, i32) {
    %c0_i32 = arith.constant 0 : i32
    %c0_i32_0 = arith.constant 0 : i32
    %c0_i32_1 = arith.constant 0 : i32
    return %c0_i32, %c0_i32_0 : i32, i32
  }
  func.func @transform_3(%arg0: i32) -> (i32, i32) {
    %c0_i32 = arith.constant 0 : i32
    %c0_i32_0 = arith.constant 0 : i32
    %c0_i32_1 = arith.constant 0 : i32
    return %c0_i32, %c0_i32_0 : i32, i32
  }
  func.func @transform_4(%arg0: i32) -> (i32, i32) {
    %c0_i32 = arith.constant 0 : i32
    %c0_i32_0 = arith.constant 0 : i32
    %c0_i32_1 = arith.constant 0 : i32
    return %c0_i32, %c0_i32_0 : i32, i32
  }
  func.func @transform_5(%arg0: i32) -> (i32, i32) {
    %c0_i32 = arith.constant 0 : i32
    %c0_i32_0 = arith.constant 0 : i32
    %c0_i32_1 = arith.constant 0 : i32
    return %c0_i32, %c0_i32_0 : i32, i32
  }
  func.func @transform_6(%arg0: i32) -> (i32, i32) {
    %c0_i32 = arith.constant 0 : i32
    %c0_i32_0 = arith.constant 0 : i32
    %c0_i32_1 = arith.constant 0 : i32
    return %c0_i32, %c0_i32_0 : i32, i32
  }
  func.func @transform_7(%arg0: i32) -> (i32, i32) {
    %c0_i32 = arith.constant 0 : i32
    %c0_i32_0 = arith.constant 0 : i32
    %c0_i32_1 = arith.constant 0 : i32
    return %c0_i32, %c0_i32_0 : i32, i32
  }
  func.func @transform_8(%arg0: i32) -> (i32, i32) {
    %c0_i32 = arith.constant 0 : i32
    %c0_i32_0 = arith.constant 0 : i32
    %c0_i32_1 = arith.constant 0 : i32
    return %c0_i32, %c0_i32_0 : i32, i32
  }
  func.func @transform_9(%arg0: i32) -> (i32, i32) {
    %c0_i32 = arith.constant 0 : i32
    %c0_i32_0 = arith.constant 0 : i32
    %c0_i32_1 = arith.constant 0 : i32
    return %c0_i32, %c0_i32_0 : i32, i32
  }
  func.func @transform_10(%arg0: i32) -> (i32, i32) {
    %c0_i32 = arith.constant 0 : i32
    %c0_i32_0 = arith.constant 0 : i32
    %c0_i32_1 = arith.constant 0 : i32
    return %c0_i32, %c0_i32_0 : i32, i32
  }
  func.func @transform_11(%arg0: i32) -> (i32, i32) {
    %c0_i32 = arith.constant 0 : i32
    %c0_i32_0 = arith.constant 0 : i32
    %c0_i32_1 = arith.constant 0 : i32
    return %c0_i32, %c0_i32_0 : i32, i32
  }
  func.func @transform_12(%arg0: i32) -> (i32, i32) {
    %c0_i32 = arith.constant 0 : i32
    %c0_i32_0 = arith.constant 0 : i32
    %c0_i32_1 = arith.constant 0 : i32
    return %c0_i32, %c0_i32_0 : i32, i32
  }
  func.func @transform_13(%arg0: i32) -> (i32, i32) {
    %c0_i32 = arith.constant 0 : i32
    %c0_i32_0 = arith.constant 0 : i32
    %c0_i32_1 = arith.constant 0 : i32
    return %c0_i32, %c0_i32_0 : i32, i32
  }
  func.func @transform_14(%arg0: i32) -> (i32, i32) {
    %c0_i32 = arith.constant 0 : i32
    %c0_i32_0 = arith.constant 0 : i32
    %c0_i32_1 = arith.constant 0 : i32
    return %c0_i32, %c0_i32_0 : i32, i32
  }
  func.func @transform_15(%arg0: i32) -> (i32, i32) {
    %c0_i32 = arith.constant 0 : i32
    %c0_i32_0 = arith.constant 0 : i32
    %c0_i32_1 = arith.constant 0 : i32
    return %c0_i32, %c0_i32_0 : i32, i32
  }
  func.func @transform_16(%arg0: i32) -> (i32, i32) {
    %c0_i32 = arith.constant 0 : i32
    %c0_i32_0 = arith.constant 0 : i32
    %c0_i32_1 = arith.constant 0 : i32
    return %c0_i32, %c0_i32_0 : i32, i32
  }
  func.func @transform_17(%arg0: i32) -> (i32, i32) {
    %c0_i32 = arith.constant 0 : i32
    %c0_i32_0 = arith.constant 0 : i32
    %c0_i32_1 = arith.constant 0 : i32
    return %c0_i32, %c0_i32_0 : i32, i32
  }
  func.func @transform_18(%arg0: i32) -> (i32, i32, i32) {
    %c0_i32 = arith.constant 0 : i32
    %c0_i32_0 = arith.constant 0 : i32
    %c0_i32_1 = arith.constant 0 : i32
    return %arg0, %c0_i32, %c0_i32_0 : i32, i32, i32
  }
  func.func @transform_19(%arg0: i32) -> (i32, i32, i32) {
    %c0_i32 = arith.constant 0 : i32
    %c0_i32_0 = arith.constant 0 : i32
    %c0_i32_1 = arith.constant 0 : i32
    return %arg0, %c0_i32, %c0_i32_0 : i32, i32, i32
  }
}

</mosaic_0001>

<llo_original>
// kernel: tpu_custom_call.1
$region0: #{tpu_custom_call.1}
  #allocation0 [shape = 'u32[]', space=smem, size = 0x4, offset = 0x4, fixed_abs, tag = 'smem constant byte address 0x4 - core index']
  #allocation1 [shape = 'u32[144,128]{1,0:T(1,128)}', space=vmem, size = 0x12000, scoped, tag = 'internal scratch']
  %s0 = inlined_call_operand.hbm [shape: f32[2,8,33], index: 0, kind: input, shape index: {}]
  %s1 = inlined_call_operand.vmem [shape: f32[2,1,8], index: 1, kind: input, shape index: {}]
  %s2 = inlined_call_operand.vmem [shape: f32[33,32], index: 2, kind: input, shape index: {}]
  %s3 = inlined_call_operand.hbm [shape: f32[1,32], index: 3, kind: input, shape index: {}]
  %s4 = inlined_call_operand.hbm [shape: f32[1,32], index: 4, kind: input, shape index: {}]
  %s5 = inlined_call_operand.hbm [shape: f32[1,32], index: 5, kind: input, shape index: {}]
  %s6 = inlined_call_operand.vmem [shape: f32[32,96], index: 6, kind: input, shape index: {}]
  %s7 = inlined_call_operand.hbm [shape: f32[1,96], index: 7, kind: input, shape index: {}]
  %s8 = inlined_call_operand.vmem [shape: f32[32,32], index: 8, kind: input, shape index: {}]
  %s9 = inlined_call_operand.vmem [shape: f32[1,32], index: 9, kind: input, shape index: {}]
  %s10 = inlined_call_operand.vmem [shape: f32[1,32], index: 10, kind: input, shape index: {}]
  %s11 = inlined_call_operand.vmem [shape: f32[1,32], index: 11, kind: input, shape index: {}]
  %s12 = inlined_call_operand.vmem [shape: f32[32,32], index: 12, kind: input, shape index: {}]
  %s13 = inlined_call_operand.vmem [shape: f32[1,32], index: 13, kind: input, shape index: {}]
  %s14 = inlined_call_operand.vmem [shape: f32[32,32], index: 14, kind: input, shape index: {}]
  %s15 = inlined_call_operand.vmem [shape: f32[1,32], index: 15, kind: input, shape index: {}]
  %s16 = inlined_call_operand.vmem [shape: f32[32,4], index: 16, kind: input, shape index: {}]
  %s17 = inlined_call_operand.vmem [shape: f32[1,4], index: 17, kind: input, shape index: {}]
  %s18 = inlined_call_operand.vmem [shape: f32[2,8,4], index: 18, kind: output, shape index: {0}]
  %s19 = inlined_call_operand.hbm [shape: f32[2,8,32], index: 19, kind: output, shape index: {1}]
  %20 = xla_tuple %s18, %s19
  %s21 = sld [smem:[#allocation0]]
  $region110: #{tpu_custom_call.1} parent=0
    _
  %s23 = ssub.s32 1, %s21
  %s24 = scalar_select 0, %s23, %s21
  $region1: #{tpu_custom_call.1} parent=0
    #allocation2 [shape = 'u8[8192]{0}', space=vmem, size = 0x2000, scoped, tag = 'input window, operand 0, single buffered']
    #allocation3 [shape = 's32[1]{0}', space=sflag, size = 0x4, scoped, tag = 'scoped memory for tpu_custom_call.1']
    #allocation4 [shape = 's32[1]{0}', space=sflag, size = 0x4, scoped, tag = 'scoped memory for tpu_custom_call.1']
    #allocation5 [shape = 'u8[512]{0}', space=vmem, size = 0x400, scoped, tag = 'input window, operand 3, single buffered']
    #allocation6 [shape = 's32[1]{0}', space=sflag, size = 0x4, scoped, tag = 'scoped memory for tpu_custom_call.1']
    #allocation7 [shape = 'u8[512]{0}', space=vmem, size = 0x400, scoped, tag = 'input window, operand 4, single buffered']
    #allocation8 [shape = 'u8[512]{0}', space=vmem, size = 0x400, scoped, tag = 'input window, operand 5, single buffered']
    #allocation9 [shape = 's32[1]{0}', space=sflag, size = 0x4, scoped, tag = 'scoped memory for tpu_custom_call.1']
    #allocation10 [shape = 'u8[512]{0}', space=vmem, size = 0x400, scoped, tag = 'input window, operand 7, single buffered']
    #allocation11 [shape = 'u8[8192]{0}', space=vmem, size = 0x2000, scoped, tag = 'output window, operand 1, single buffered']
    %25 = vsyncpa [#allocation3], 0
    %26 = vsyncpa [#allocation6], 0
    %27 = vsyncpa [#allocation9], 0
    %28 = vsyncpa [#allocation4], 0
    // Predicated region
    $region2: #{tpu_custom_call.1} parent=1 // pred_check
      _
    $region3: #{tpu_custom_call.1} parent=1 // pred_check_branch
      %30 = sbr.rel (0) target = $region5
    $region4: #{tpu_custom_call.1} parent=1 // pred_region
      %s32 = ssub.s32 256, 256
      %33 = vsyncadd [#allocation3], %s32
      %s34 = sshll.u32 [#allocation2], 4
      %s35 = int_to_ptr.vmem [resolvable:$true] %s34
      %40 = dma.hbm_to_vmem [thread:$0]  %s0, 256, %s35, [#allocation3], 128, 128, 8
    $region5: #{tpu_custom_call.1} parent=1 // pred_fallthru
      _
    // Predicated region
    $region6: #{tpu_custom_call.1} parent=1 // pred_check
      _
    $region7: #{tpu_custom_call.1} parent=1 // pred_check_branch
      %42 = sbr.rel (0) target = $region9
    $region8: #{tpu_custom_call.1} parent=1 // pred_region
      _
    $region9: #{tpu_custom_call.1} parent=1 // pred_fallthru
      _
    // Predicated region
    $region10: #{tpu_custom_call.1} parent=1 // pred_check
      _
    $region11: #{tpu_custom_call.1} parent=1 // pred_check_branch
      %44 = sbr.rel (0) target = $region13
    $region12: #{tpu_custom_call.1} parent=1 // pred_region
      _
    $region13: #{tpu_custom_call.1} parent=1 // pred_fallthru
      _
    // Predicated region
    $region14: #{tpu_custom_call.1} parent=1 // pred_check
      _
    $region15: #{tpu_custom_call.1} parent=1 // pred_check_branch
      %46 = sbr.rel (0) target = $region17
    $region16: #{tpu_custom_call.1} parent=1 // pred_region
      %s48 = ssub.s32 16, 16
      %49 = vsyncadd [#allocation6], %s48
      %s51 = sshll.u32 [#allocation5], 4
      %s52 = int_to_ptr.vmem [resolvable:$true] %s51
      %54 = dma.hbm_to_vmem [thread:$0]  %s3, 16, %s52, [#allocation6]
    $region17: #{tpu_custom_call.1} parent=1 // pred_fallthru
      _
    // Predicated region
    $region18: #{tpu_custom_call.1} parent=1 // pred_check
      _
    $region19: #{tpu_custom_call.1} parent=1 // pred_check_branch
      %56 = sbr.rel (0) target = $region21
    $region20: #{tpu_custom_call.1} parent=1 // pred_region
      %s58 = ssub.s32 16, 16
      %59 = vsyncadd [#allocation6], %s58
      %s61 = sshll.u32 [#allocation7], 4
      %s62 = int_to_ptr.vmem [resolvable:$true] %s61
      %64 = dma.hbm_to_vmem [thread:$0]  %s4, 16, %s62, [#allocation6]
    $region21: #{tpu_custom_call.1} parent=1 // pred_fallthru
      _
    // Predicated region
    $region22: #{tpu_custom_call.1} parent=1 // pred_check
      _
    $region23: #{tpu_custom_call.1} parent=1 // pred_check_branch
      %66 = sbr.rel (0) target = $region25
    $region24: #{tpu_custom_call.1} parent=1 // pred_region
      %s68 = ssub.s32 16, 16
      %69 = vsyncadd [#allocation9], %s68
      %s71 = sshll.u32 [#allocation8], 4
      %s72 = int_to_ptr.vmem [resolvable:$true] %s71
      %74 = dma.hbm_to_vmem [thread:$0]  %s5, 16, %s72, [#allocation9]
    $region25: #{tpu_custom_call.1} parent=1 // pred_fallthru
      _
    // Predicated region
    $region26: #{tpu_custom_call.1} parent=1 // pred_check
      _
    $region27: #{tpu_custom_call.1} parent=1 // pred_check_branch
      %76 = sbr.rel (0) target = $region29
    $region28: #{tpu_custom_call.1} parent=1 // pred_region
      _
    $region29: #{tpu_custom_call.1} parent=1 // pred_fallthru
      _
    // Predicated region
    $region30: #{tpu_custom_call.1} parent=1 // pred_check
      _
    $region31: #{tpu_custom_call.1} parent=1 // pred_check_branch
      %78 = sbr.rel (0) target = $region33
    $region32: #{tpu_custom_call.1} parent=1 // pred_region
      %s80 = ssub.s32 16, 16
      %81 = vsyncadd [#allocation9], %s80
      %s83 = sshll.u32 [#allocation10], 4
      %s84 = int_to_ptr.vmem [resolvable:$true] %s83
      %86 = dma.hbm_to_vmem [thread:$0]  %s7, 16, %s84, [#allocation9]
    $region33: #{tpu_custom_call.1} parent=1 // pred_fallthru
      _
    // Predicated region
    $region34: #{tpu_custom_call.1} parent=1 // pred_check
      _
    $region35: #{tpu_custom_call.1} parent=1 // pred_check_branch
      %88 = sbr.rel (0) target = $region37
    $region36: #{tpu_custom_call.1} parent=1 // pred_region
      _
    $region37: #{tpu_custom_call.1} parent=1 // pred_fallthru
      _
    // Predicated region
    $region38: #{tpu_custom_call.1} parent=1 // pred_check
      _
    $region39: #{tpu_custom_call.1} parent=1 // pred_check_branch
      %90 = sbr.rel (0) target = $region41
    $region40: #{tpu_custom_call.1} parent=1 // pred_region
      _
    $region41: #{tpu_custom_call.1} parent=1 // pred_fallthru
      _
    // Predicated region
    $region42: #{tpu_custom_call.1} parent=1 // pred_check
      _
    $region43: #{tpu_custom_call.1} parent=1 // pred_check_branch
      %92 = sbr.rel (0) target = $region45
    $region44: #{tpu_custom_call.1} parent=1 // pred_region
      _
    $region45: #{tpu_custom_call.1} parent=1 // pred_fallthru
      _
    // Predicated region
    $region46: #{tpu_custom_call.1} parent=1 // pred_check
      _
    $region47: #{tpu_custom_call.1} parent=1 // pred_check_branch
      %94 = sbr.rel (0) target = $region49
    $region48: #{tpu_custom_call.1} parent=1 // pred_region
      _
    $region49: #{tpu_custom_call.1} parent=1 // pred_fallthru
      _
    // Predicated region
    $region50: #{tpu_custom_call.1} parent=1 // pred_check
      _
    $region51: #{tpu_custom_call.1} parent=1 // pred_check_branch
      %96 = sbr.rel (0) target = $region53
    $region52: #{tpu_custom_call.1} parent=1 // pred_region
      _
    $region53: #{tpu_custom_call.1} parent=1 // pred_fallthru
      _
    // Predicated region
    $region54: #{tpu_custom_call.1} parent=1 // pred_check
      _
    $region55: #{tpu_custom_call.1} parent=1 // pred_check_branch
      %98 = sbr.rel (0) target = $region57
    $region56: #{tpu_custom_call.1} parent=1 // pred_region
      _
    $region57: #{tpu_custom_call.1} parent=1 // pred_fallthru
      _
    // Predicated region
    $region58: #{tpu_custom_call.1} parent=1 // pred_check
      _
    $region59: #{tpu_custom_call.1} parent=1 // pred_check_branch
      %100 = sbr.rel (0) target = $region61
    $region60: #{tpu_custom_call.1} parent=1 // pred_region
      _
    $region61: #{tpu_custom_call.1} parent=1 // pred_fallthru
      _
    // Predicated region
    $region62: #{tpu_custom_call.1} parent=1 // pred_check
      _
    $region63: #{tpu_custom_call.1} parent=1 // pred_check_branch
      %102 = sbr.rel (0) target = $region65
    $region64: #{tpu_custom_call.1} parent=1 // pred_region
      _
    $region65: #{tpu_custom_call.1} parent=1 // pred_fallthru
      _
    // Predicated region
    $region66: #{tpu_custom_call.1} parent=1 // pred_check
      _
    $region67: #{tpu_custom_call.1} parent=1 // pred_check_branch
      %104 = sbr.rel (0) target = $region69
    $region68: #{tpu_custom_call.1} parent=1 // pred_region
      _
    $region69: #{tpu_custom_call.1} parent=1 // pred_fallthru
      _
    // Predicated region
    $region70: #{tpu_custom_call.1} parent=1 // pred_check
      _
    $region71: #{tpu_custom_call.1} parent=1 // pred_check_branch
      %106 = sbr.rel (0) target = $region73
    $region72: #{tpu_custom_call.1} parent=1 // pred_region
      _
    $region73: #{tpu_custom_call.1} parent=1 // pred_fallthru
      _
    // Predicated region
    $region74: #{tpu_custom_call.1} parent=1 // pred_check
      _
    $region75: #{tpu_custom_call.1} parent=1 // pred_check_branch
      %108 = sbr.rel (0) target = $region77
    $region76: #{tpu_custom_call.1} parent=1 // pred_region
      %109 = dma.done [#allocation3], 256
    $region77: #{tpu_custom_call.1} parent=1 // pred_fallthru
      _
    // Predicated region
    $region78: #{tpu_custom_call.1} parent=1 // pred_check
      _
    $region79: #{tpu_custom_call.1} parent=1 // pred_check_branch
      %111 = sbr.rel (0) target = $region81
    $region80: #{tpu_custom_call.1} parent=1 // pred_region
      %112 = dma.done [#allocation6], 16
    $region81: #{tpu_custom_call.1} parent=1 // pred_fallthru
      _
    // Predicated region
    $region82: #{tpu_custom_call.1} parent=1 // pred_check
      _
    $region83: #{tpu_custom_call.1} parent=1 // pred_check_branch
      %114 = sbr.rel (0) target = $region85
    $region84: #{tpu_custom_call.1} parent=1 // pred_region
      %115 = dma.done [#allocation6], 16
    $region85: #{tpu_custom_call.1} parent=1 // pred_fallthru
      _
    // Predicated region
    $region86: #{tpu_custom_call.1} parent=1 // pred_check
      _
    $region87: #{tpu_custom_call.1} parent=1 // pred_check_branch
      %117 = sbr.rel (0) target = $region89
    $region88: #{tpu_custom_call.1} parent=1 // pred_region
      %118 = dma.done [#allocation9], 16
    $region89: #{tpu_custom_call.1} parent=1 // pred_fallthru
      _
    // Predicated region
    $region90: #{tpu_custom_call.1} parent=1 // pred_check
      _
    $region91: #{tpu_custom_call.1} parent=1 // pred_check_branch
      %120 = sbr.rel (0) target = $region93
    $region92: #{tpu_custom_call.1} parent=1 // pred_region
      %121 = dma.done [#allocation9], 16
    $region93: #{tpu_custom_call.1} parent=1 // pred_fallthru
      _
    %v123 = vld [vmem:[#allocation2] sm:$0xff]
    %v124 = vld [vmem:[#allocation2 + $0x8] sm:$0xff]
    %v125 = vld [vmem:[%s1] sm:$0x1]
    %v126 = vld [vmem:[%s1 + $0x1] sm:$0x1]
    %v127 = vpack.c.bf16 %v124, %v123
    %v128 = vld [vmem:[%s2] sm:$0xff]
    %v129 = vld [vmem:[%s2 + $0x8] sm:$0xff]
    %v130 = vld [vmem:[%s2 + $0x10] sm:$0xff]
    %v131 = vld [vmem:[%s2 + $0x18] sm:$0xff]
    %v132 = vld [vmem:[%s2 + $0x20] sm:$0x1]
    %v133 = vpack.c.bf16 %v129, %v128
    %v134 = vpack.c.bf16 %v131, %v130
    %v135 = vpack.c.bf16 %v132, %v132
    %v136 = vld [vmem:[#allocation5] sm:$0x1]
    %v138 = vlaneseq
    %v139 = vshrl.u32 %v138, 7
    %v140 = vsub.s32 0, %v139
    %v141 = vrot.slane %v136, %v140
    %vm143 = vcmask 269312
    %v145 = vsel %vm143, %v127, 0
    %vm147 = vcmask 1040384
    %v148 = vsel 0, 4294967295, 65535
    %v149 = vsel %vm147, %v148, 0
    %v151 = vand.u32 %v135, %v149
    %153 = vmatprep.subr.bf16.mxu0 0
    %154 = vmatpush1.bf16.msra.mxu0 %v133
    %155 = vmatprep.subr.bf16.mxu0 0
    %156 = vmatpush1.bf16.msra.mxu0 %v134
    %157 = vmatprep.subr.bf16.mxu0 0
    %158 = vmatpush1.bf16.msra.mxu0 %v151
    %159 = vmatprep.subr.bf16.mxu0 0
    %160 = vmatpush1.bf16.msra.mxu0 0
    %161 = vmatprep.subr.bf16.mxu0 0
    %162 = vmatpush1.bf16.msra.mxu0 0
    %163 = vmatprep.subr.bf16.mxu0 0
    %164 = vmatpush1.bf16.msra.mxu0 0
    %165 = vmatprep.subr.bf16.mxu0 0
    %166 = vmatpush1.bf16.msra.mxu0 0
    %167 = vmatprep.subr.bf16.mxu0 0
    %168 = vmatpush1.bf16.msra.mxu0 0
    %169 = vmatprep.subr.bf16.mxu0 0
    %170 = vmatpush1.bf16.msra.mxu0 0
    %171 = vmatprep.subr.bf16.mxu0 0
    %172 = vmatpush1.bf16.msra.mxu0 0
    %173 = vmatprep.subr.bf16.mxu0 0
    %174 = vmatpush1.bf16.msra.mxu0 0
    %175 = vmatprep.subr.bf16.mxu0 0
    %176 = vmatpush1.bf16.msra.mxu0 0
    %177 = vmatprep.subr.bf16.mxu0 0
    %178 = vmatpush1.bf16.msra.mxu0 0
    %179 = vmatprep.subr.bf16.mxu0 0
    %180 = vmatpush1.bf16.msra.mxu0 0
    %181 = vmatprep.subr.bf16.mxu0 0
    %182 = vmatpush1.bf16.msra.mxu0 0
    %183 = vmatprep.subr.bf16.mxu0 0
    %184 = vmatpush1.bf16.msra.mxu0 0
    %185 = vmatprep.mubr.bf16.mxu0 0
    %186 = vmatmul.mubr.bf16.gmra.mrb[0].mxu0 %v145
    %v187 = vpop.f32.mrb[0].mxu0
    %v188 = vadd.f32 %v141, %v187
    %v189 = vpop.f32.mrb[0].mxu0
    %v190 = vpop.f32.mrb[0].mxu0
    %v191 = vadd.f32 %v141, %v190
    %v192 = vpop.f32.mrb[0].mxu0
    %193 = vdwg.mxu0
    %v194 = vld [vmem:[#allocation7] sm:$0x1]
    %v195 = vld [vmem:[#allocation8] sm:$0x1]
    %vm196 = vcmask 261120
    %v197 = vsel %vm196, %v188, 0.0
    %198 = vadd.xlane.f32.xlu0 %v197
    %v199 = vpop.xlane.xlu0 %198
    %v200 = vsel %vm196, %v191, 0.0
    %201 = vadd.xlane.f32.xlu0 %v200
    %v202 = vpop.xlane.xlu0 %201
    %v203 = vrcp.pop 32.0
    %v204 = vmul.f32 %v199, %v203
    %v205 = vmul.f32 %v202, %v203
    %v206 = vsub.f32 %v188, %v204
    %v207 = vsub.f32 %v191, %v205
    %v208 = vmul.f32 %v206, %v206
    %v209 = vmul.f32 %v207, %v207
    %v210 = vsel %vm196, %v208, 0.0
    %211 = vadd.xlane.f32.xlu0 %v210
    %v212 = vpop.xlane.xlu0 %211
    %v213 = vsel %vm196, %v209, 0.0
    %214 = vadd.xlane.f32.xlu0 %v213
    %v215 = vpop.xlane.xlu0 %214
    %v216 = vmul.f32 %v212, %v203
    %v217 = vmul.f32 %v215, %v203
    %v218 = vadd.f32 %v216, 1e-05
    %v219 = vadd.f32 %v217, 1e-05
    %v220 = vrsqrt.pop %v218
    %v221 = vrsqrt.pop %v219
    %v222 = vmul.f32 %v206, %v220
    %v223 = vmul.f32 %v207, %v221
    %v225 = vlaneseq
    %v226 = vshrl.u32 %v225, 7
    %v227 = vsub.s32 0, %v226
    %v228 = vrot.slane %v194, %v227
    %v230 = vmul.f32 %v222, %v228
    %v231 = vmul.f32 %v223, %v228
    %v233 = vlaneseq
    %v234 = vshrl.u32 %v233, 7
    %v235 = vsub.s32 0, %v234
    %v236 = vrot.slane %v195, %v235
    %v238 = vadd.f32 %v230, %v236
    %v239 = vadd.f32 %v231, %v236
    %v240 = vpack.c.bf16 %v239, %v238
    %v241 = vld [vmem:[%s6] sm:$0xff]
    %v242 = vld [vmem:[%s6 + $0x8] sm:$0xff]
    %v243 = vld [vmem:[%s6 + $0x10] sm:$0xff]
    %v244 = vld [vmem:[%s6 + $0x18] sm:$0xff]
    %v245 = vpack.c.bf16 %v242, %v241
    %v246 = vpack.c.bf16 %v244, %v243
    %v247 = vld [vmem:[#allocation10] sm:$0x1]
    %v249 = vlaneseq
    %v250 = vshrl.u32 %v249, 7
    %v251 = vsub.s32 0, %v250
    %v252 = vrot.slane %v247, %v251
    %v255 = vsel %vm196, %v240, 0
    %257 = vmatprep.subr.bf16.mxu0 0
    %258 = vmatpush1.bf16.msra.mxu0 %v245
    %259 = vmatprep.subr.bf16.mxu0 0
    %260 = vmatpush1.bf16.msra.mxu0 %v246
    %261 = vmatprep.subr.bf16.mxu0 0
    %262 = vmatpush1.bf16.msra.mxu0 0
    %263 = vmatprep.subr.bf16.mxu0 0
    %264 = vmatpush1.bf16.msra.mxu0 0
    %265 = vmatprep.subr.bf16.mxu0 0
    %266 = vmatpush1.bf16.msra.mxu0 0
    %267 = vmatprep.subr.bf16.mxu0 0
    %268 = vmatpush1.bf16.msra.mxu0 0
    %269 = vmatprep.subr.bf16.mxu0 0
    %270 = vmatpush1.bf16.msra.mxu0 0
    %271 = vmatprep.subr.bf16.mxu0 0
    %272 = vmatpush1.bf16.msra.mxu0 0
    %273 = vmatprep.subr.bf16.mxu0 0
    %274 = vmatpush1.bf16.msra.mxu0 0
    %275 = vmatprep.subr.bf16.mxu0 0
    %276 = vmatpush1.bf16.msra.mxu0 0
    %277 = vmatprep.subr.bf16.mxu0 0
    %278 = vmatpush1.bf16.msra.mxu0 0
    %279 = vmatprep.subr.bf16.mxu0 0
    %280 = vmatpush1.bf16.msra.mxu0 0
    %281 = vmatprep.subr.bf16.mxu0 0
    %282 = vmatpush1.bf16.msra.mxu0 0
    %283 = vmatprep.subr.bf16.mxu0 0
    %284 = vmatpush1.bf16.msra.mxu0 0
    %285 = vmatprep.subr.bf16.mxu0 0
    %286 = vmatpush1.bf16.msra.mxu0 0
    %287 = vmatprep.subr.bf16.mxu0 0
    %288 = vmatpush1.bf16.msra.mxu0 0
    %289 = vmatprep.mubr.bf16.mxu0 0
    %290 = vmatmul.mubr.bf16.gmra.mrb[0].mxu0 %v255
    %v291 = vpop.f32.mrb[0].mxu0
    %v292 = vadd.f32 %v252, %v291
    %v293 = vpop.f32.mrb[0].mxu0
    %v294 = vpop.f32.mrb[0].mxu0
    %v295 = vadd.f32 %v252, %v294
    %v296 = vpop.f32.mrb[0].mxu0
    %297 = vdwg.mxu0
    %v298 = vpack.c.bf16 %v292, %v292
    %v299 = vpack.c.bf16 %v295, %v295
    %301 = vrot.lane.b32.xlu0 %v298, 96
    %v302 = vpop.permute.xlu0 %301
    %vm303 = vcmask 64512
    %v305 = vsel %vm303, %v298, 0
    %v308 = vsel %vm303, %v302, 0
    %310 = vmatprep.subr.bf16.mxu0 0
    %311 = vmatpush1.bf16.xpose.msra.mxu0 %v308
    %312 = vmatprep.subr.bf16.mxu0 0
    %313 = vmatpush1.bf16.xpose.msra.mxu0 0
    %314 = vmatprep.subr.bf16.mxu0 0
    %315 = vmatpush1.bf16.xpose.msra.mxu0 0
    %316 = vmatprep.subr.bf16.mxu0 0
    %317 = vmatpush1.bf16.xpose.msra.mxu0 0
    %318 = vmatprep.subr.bf16.mxu0 0
    %319 = vmatpush1.bf16.xpose.msra.mxu0 0
    %320 = vmatprep.subr.bf16.mxu0 0
    %321 = vmatpush1.bf16.xpose.msra.mxu0 0
    %322 = vmatprep.subr.bf16.mxu0 0
    %323 = vmatpush1.bf16.xpose.msra.mxu0 0
    %324 = vmatprep.subr.bf16.mxu0 0
    %325 = vmatpush1.bf16.xpose.msra.mxu0 0
    %326 = vmatprep.subr.bf16.mxu0 0
    %327 = vmatpush1.bf16.xpose.msra.mxu0 0
    %328 = vmatprep.subr.bf16.mxu0 0
    %329 = vmatpush1.bf16.xpose.msra.mxu0 0
    %330 = vmatprep.subr.bf16.mxu0 0
    %331 = vmatpush1.bf16.xpose.msra.mxu0 0
    %332 = vmatprep.subr.bf16.mxu0 0
    %333 = vmatpush1.bf16.xpose.msra.mxu0 0
    %334 = vmatprep.subr.bf16.mxu0 0
    %335 = vmatpush1.bf16.xpose.msra.mxu0 0
    %336 = vmatprep.subr.bf16.mxu0 0
    %337 = vmatpush1.bf16.xpose.msra.mxu0 0
    %338 = vmatprep.subr.bf16.mxu0 0
    %339 = vmatpush1.bf16.xpose.msra.mxu0 0
    %340 = vmatprep.subr.bf16.mxu0 0
    %341 = vmatpush1.bf16.xpose.msra.mxu0 0
    %342 = vmatprep.mubr.bf16.mxu0 0
    %343 = vmatmul.mubr.bf16.gmra.mrb[0].mxu0 %v305
    %v344 = vpop.f32.mrb[0].mxu0
    %v345 = vadd.f32 0.0, %v344
    %v346 = vpop.f32.mrb[0].mxu0
    %v347 = vpop.f32.mrb[0].mxu0
    %v348 = vpop.f32.mrb[0].mxu0
    %349 = vdwg.mxu0
    %351 = vrot.lane.b32.xlu0 %v299, 96
    %v352 = vpop.permute.xlu0 %351
    %v354 = vsel %vm303, %v299, 0
    %v357 = vsel %vm303, %v352, 0
    %359 = vmatprep.subr.bf16.mxu0 0
    %360 = vmatpush1.bf16.xpose.msra.mxu0 %v357
    %361 = vmatprep.subr.bf16.mxu0 0
    %362 = vmatpush1.bf16.xpose.msra.mxu0 0
    %363 = vmatprep.subr.bf16.mxu0 0
    %364 = vmatpush1.bf16.xpose.msra.mxu0 0
    %365 = vmatprep.subr.bf16.mxu0 0
    %366 = vmatpush1.bf16.xpose.msra.mxu0 0
    %367 = vmatprep.subr.bf16.mxu0 0
    %368 = vmatpush1.bf16.xpose.msra.mxu0 0
    %369 = vmatprep.subr.bf16.mxu0 0
    %370 = vmatpush1.bf16.xpose.msra.mxu0 0
    %371 = vmatprep.subr.bf16.mxu0 0
    %372 = vmatpush1.bf16.xpose.msra.mxu0 0
    %373 = vmatprep.subr.bf16.mxu0 0
    %374 = vmatpush1.bf16.xpose.msra.mxu0 0
    %375 = vmatprep.subr.bf16.mxu0 0
    %376 = vmatpush1.bf16.xpose.msra.mxu0 0
    %377 = vmatprep.subr.bf16.mxu0 0
    %378 = vmatpush1.bf16.xpose.msra.mxu0 0
    %379 = vmatprep.subr.bf16.mxu0 0
    %380 = vmatpush1.bf16.xpose.msra.mxu0 0
    %381 = vmatprep.subr.bf16.mxu0 0
    %382 = vmatpush1.bf16.xpose.msra.mxu0 0
    %383 = vmatprep.subr.bf16.mxu0 0
    %384 = vmatpush1.bf16.xpose.msra.mxu0 0
    %385 = vmatprep.subr.bf16.mxu0 0
    %386 = vmatpush1.bf16.xpose.msra.mxu0 0
    %387 = vmatprep.subr.bf16.mxu0 0
    %388 = vmatpush1.bf16.xpose.msra.mxu0 0
    %389 = vmatprep.subr.bf16.mxu0 0
    %390 = vmatpush1.bf16.xpose.msra.mxu0 0
    %391 = vmatprep.mubr.bf16.mxu0 0
    %392 = vmatmul.mubr.bf16.gmra.mrb[0].mxu0 %v354
    %v393 = vpop.f32.mrb[0].mxu0
    %v394 = vadd.f32 0.0, %v393
    %v395 = vpop.f32.mrb[0].mxu0
    %v396 = vpop.f32.mrb[0].mxu0
    %v397 = vpop.f32.mrb[0].mxu0
    %398 = vdwg.mxu0
    %v399 = vmul.f32 %v345, 0.35355338
    %v400 = vmul.f32 %v394, 0.35355338
    %vm401 = vcmp.gt.f32.partialorder %v125, 0.0
    %vm402 = vcmp.gt.f32.partialorder %v126, 0.0
    %v403 = vsel %vm401, 1, 0
    %v404 = vsel %vm402, 1, 0
    %v405 = vlaneseq
    %v406 = vshrl.u32 %v405, 7
    %v407 = vsub.s32 0, %v406
    %v408 = vrot.slane %v403, %v407
    %v409 = vlaneseq
    %v410 = vshrl.u32 %v409, 7
    %v411 = vsub.s32 0, %v410
    %v412 = vrot.slane %v404, %v411
    %vm413 = vcmp.eq.s32.totalorder %v408, 1
    %vm414 = vcmp.eq.s32.totalorder %v412, 1
    %v415 = vsel %vm413, %v399, -1e+30
    %v416 = vsel %vm414, %v400, -1e+30
    %v417 = vsel %vm303, %v415, -inf
    %418 = vmax.xlane.f32.xlu0 %v417
    %v419 = vpop.xlane.xlu0 %418
    %v420 = vsel %vm303, %v416, -inf
    %421 = vmax.xlane.f32.xlu0 %v420
    %v422 = vpop.xlane.xlu0 %421
    %v423 = vsub.f32 %v415, %v419
    %v424 = vsub.f32 %v416, %v422
    %v425 = vmul.f32 %v423, 1.442695
    %v426 = vpow.pop %v425
    %v427 = vmul.f32 %v424, 1.442695
    %v428 = vpow.pop %v427
    %v429 = vsel %vm303, %v426, 0.0
    %430 = vadd.xlane.f32.xlu0 %v429
    %v431 = vpop.xlane.xlu0 %430
    %v432 = vsel %vm303, %v428, 0.0
    %433 = vadd.xlane.f32.xlu0 %v432
    %v434 = vpop.xlane.xlu0 %433
    %v435 = vrcp.pop %v431
    %v436 = vmul.f32 %v426, %v435
    %v437 = vrcp.pop %v434
    %v438 = vmul.f32 %v428, %v437
    %439 = vst.msk [vmem:[#allocation11] sm:$0xff] %vm303, %v436
    %440 = vst.msk [vmem:[#allocation11 + $0x8] sm:$0xff] %vm303, %v438
    %v441 = vpack.c.bf16 %v436, %v436
    %v442 = vpack.c.bf16 %v438, %v438
    %443 = vrot.lane.b32.xlu0 %v298, 64
    %v444 = vpop.permute.xlu0 %443
    %v446 = vsel %vm303, %v441, 0
    %vm448 = vcmask 1043456
    %v450 = vsel %vm448, %v444, 0
    %452 = vmatprep.subr.bf16.mxu0 0
    %453 = vmatpush1.bf16.msra.mxu0 %v450
    %454 = vmatprep.subr.bf16.mxu0 0
    %455 = vmatpush1.bf16.msra.mxu0 0
    %456 = vmatprep.subr.bf16.mxu0 0
    %457 = vmatpush1.bf16.msra.mxu0 0
    %458 = vmatprep.subr.bf16.mxu0 0
    %459 = vmatpush1.bf16.msra.mxu0 0
    %460 = vmatprep.subr.bf16.mxu0 0
    %461 = vmatpush1.bf16.msra.mxu0 0
    %462 = vmatprep.subr.bf16.mxu0 0
    %463 = vmatpush1.bf16.msra.mxu0 0
    %464 = vmatprep.subr.bf16.mxu0 0
    %465 = vmatpush1.bf16.msra.mxu0 0
    %466 = vmatprep.subr.bf16.mxu0 0
    %467 = vmatpush1.bf16.msra.mxu0 0
    %468 = vmatprep.subr.bf16.mxu0 0
    %469 = vmatpush1.bf16.msra.mxu0 0
    %470 = vmatprep.subr.bf16.mxu0 0
    %471 = vmatpush1.bf16.msra.mxu0 0
    %472 = vmatprep.subr.bf16.mxu0 0
    %473 = vmatpush1.bf16.msra.mxu0 0
    %474 = vmatprep.subr.bf16.mxu0 0
    %475 = vmatpush1.bf16.msra.mxu0 0
    %476 = vmatprep.subr.bf16.mxu0 0
    %477 = vmatpush1.bf16.msra.mxu0 0
    %478 = vmatprep.subr.bf16.mxu0 0
    %479 = vmatpush1.bf16.msra.mxu0 0
    %480 = vmatprep.subr.bf16.mxu0 0
    %481 = vmatpush1.bf16.msra.mxu0 0
    %482 = vmatprep.subr.bf16.mxu0 0
    %483 = vmatpush1.bf16.msra.mxu0 0
    %484 = vmatprep.mubr.bf16.mxu0 0
    %485 = vmatmul.mubr.bf16.gmra.mrb[0].mxu0 %v446
    %v486 = vpop.f32.mrb[0].mxu0
    %v487 = vadd.f32 0.0, %v486
    %v488 = vpop.f32.mrb[0].mxu0
    %v489 = vpop.f32.mrb[0].mxu0
    %v490 = vpop.f32.mrb[0].mxu0
    %491 = vdwg.mxu0
    %492 = vrot.lane.b32.xlu0 %v299, 64
    %v493 = vpop.permute.xlu0 %492
    %v495 = vsel %vm303, %v442, 0
    %v498 = vsel %vm448, %v493, 0
    %500 = vmatprep.subr.bf16.mxu0 0
    %501 = vmatpush1.bf16.msra.mxu0 %v498
    %502 = vmatprep.subr.bf16.mxu0 0
    %503 = vmatpush1.bf16.msra.mxu0 0
    %504 = vmatprep.subr.bf16.mxu0 0
    %505 = vmatpush1.bf16.msra.mxu0 0
    %506 = vmatprep.subr.bf16.mxu0 0
    %507 = vmatpush1.bf16.msra.mxu0 0
    %508 = vmatprep.subr.bf16.mxu0 0
    %509 = vmatpush1.bf16.msra.mxu0 0
    %510 = vmatprep.subr.bf16.mxu0 0
    %511 = vmatpush1.bf16.msra.mxu0 0
    %512 = vmatprep.subr.bf16.mxu0 0
    %513 = vmatpush1.bf16.msra.mxu0 0
    %514 = vmatprep.subr.bf16.mxu0 0
    %515 = vmatpush1.bf16.msra.mxu0 0
    %516 = vmatprep.subr.bf16.mxu0 0
    %517 = vmatpush1.bf16.msra.mxu0 0
    %518 = vmatprep.subr.bf16.mxu0 0
    %519 = vmatpush1.bf16.msra.mxu0 0
    %520 = vmatprep.subr.bf16.mxu0 0
    %521 = vmatpush1.bf16.msra.mxu0 0
    %522 = vmatprep.subr.bf16.mxu0 0
    %523 = vmatpush1.bf16.msra.mxu0 0
    %524 = vmatprep.subr.bf16.mxu0 0
    %525 = vmatpush1.bf16.msra.mxu0 0
    %526 = vmatprep.subr.bf16.mxu0 0
    %527 = vmatpush1.bf16.msra.mxu0 0
    %528 = vmatprep.subr.bf16.mxu0 0
    %529 = vmatpush1.bf16.msra.mxu0 0
    %530 = vmatprep.subr.bf16.mxu0 0
    %531 = vmatpush1.bf16.msra.mxu0 0
    %532 = vmatprep.mubr.bf16.mxu0 0
    %533 = vmatmul.mubr.bf16.gmra.mrb[0].mxu0 %v495
    %v534 = vpop.f32.mrb[0].mxu0
    %v535 = vadd.f32 0.0, %v534
    %v536 = vpop.f32.mrb[0].mxu0
    %v537 = vpop.f32.mrb[0].mxu0
    %v538 = vpop.f32.mrb[0].mxu0
    %539 = vdwg.mxu0
    %v540 = vpack.c.bf16 %v535, %v487
    %v541 = vld [vmem:[%s8] sm:$0xff]
    %v542 = vpack.c.bf16 %v541, %v541
    %543 = vrot.lane.b32.xlu0 %v298, 120
    %v544 = vpop.permute.xlu0 %543
    %545 = vrot.lane.b32.xlu0 %v298, 88
    %v546 = vpop.permute.xlu0 %545
    %v548 = vsel %vm303, %v544, 0
    %v551 = vsel %vm303, %v546, 0
    %553 = vmatprep.subr.bf16.mxu0 0
    %554 = vmatpush1.bf16.xpose.msra.mxu0 %v551
    %555 = vmatprep.subr.bf16.mxu0 0
    %556 = vmatpush1.bf16.xpose.msra.mxu0 0
    %557 = vmatprep.subr.bf16.mxu0 0
    %558 = vmatpush1.bf16.xpose.msra.mxu0 0
    %559 = vmatprep.subr.bf16.mxu0 0
    %560 = vmatpush1.bf16.xpose.msra.mxu0 0
    %561 = vmatprep.subr.bf16.mxu0 0
    %562 = vmatpush1.bf16.xpose.msra.mxu0 0
    %563 = vmatprep.subr.bf16.mxu0 0
    %564 = vmatpush1.bf16.xpose.msra.mxu0 0
    %565 = vmatprep.subr.bf16.mxu0 0
    %566 = vmatpush1.bf16.xpose.msra.mxu0 0
    %567 = vmatprep.subr.bf16.mxu0 0
    %568 = vmatpush1.bf16.xpose.msra.mxu0 0
    %569 = vmatprep.subr.bf16.mxu0 0
    %570 = vmatpush1.bf16.xpose.msra.mxu0 0
    %571 = vmatprep.subr.bf16.mxu0 0
    %572 = vmatpush1.bf16.xpose.msra.mxu0 0
    %573 = vmatprep.subr.bf16.mxu0 0
    %574 = vmatpush1.bf16.xpose.msra.mxu0 0
    %575 = vmatprep.subr.bf16.mxu0 0
    %576 = vmatpush1.bf16.xpose.msra.mxu0 0
    %577 = vmatprep.subr.bf16.mxu0 0
    %578 = vmatpush1.bf16.xpose.msra.mxu0 0
    %579 = vmatprep.subr.bf16.mxu0 0
    %580 = vmatpush1.bf16.xpose.msra.mxu0 0
    %581 = vmatprep.subr.bf16.mxu0 0
    %582 = vmatpush1.bf16.xpose.msra.mxu0 0
    %583 = vmatprep.subr.bf16.mxu0 0
    %584 = vmatpush1.bf16.xpose.msra.mxu0 0
    %585 = vmatprep.mubr.bf16.mxu0 0
    %586 = vmatmul.mubr.bf16.gmra.mrb[0].mxu0 %v548
    %v587 = vpop.f32.mrb[0].mxu0
    %v588 = vadd.f32 0.0, %v587
    %v589 = vpop.f32.mrb[0].mxu0
    %v590 = vpop.f32.mrb[0].mxu0
    %v591 = vpop.f32.mrb[0].mxu0
    %592 = vdwg.mxu0
    %593 = vrot.lane.b32.xlu0 %v299, 120
    %v594 = vpop.permute.xlu0 %593
    %595 = vrot.lane.b32.xlu0 %v299, 88
    %v596 = vpop.permute.xlu0 %595
    %v598 = vsel %vm303, %v594, 0
    %v601 = vsel %vm303, %v596, 0
    %603 = vmatprep.subr.bf16.mxu0 0
    %604 = vmatpush1.bf16.xpose.msra.mxu0 %v601
    %605 = vmatprep.subr.bf16.mxu0 0
    %606 = vmatpush1.bf16.xpose.msra.mxu0 0
    %607 = vmatprep.subr.bf16.mxu0 0
    %608 = vmatpush1.bf16.xpose.msra.mxu0 0
    %609 = vmatprep.subr.bf16.mxu0 0
    %610 = vmatpush1.bf16.xpose.msra.mxu0 0
    %611 = vmatprep.subr.bf16.mxu0 0
    %612 = vmatpush1.bf16.xpose.msra.mxu0 0
    %613 = vmatprep.subr.bf16.mxu0 0
    %614 = vmatpush1.bf16.xpose.msra.mxu0 0
    %615 = vmatprep.subr.bf16.mxu0 0
    %616 = vmatpush1.bf16.xpose.msra.mxu0 0
    %617 = vmatprep.subr.bf16.mxu0 0
    %618 = vmatpush1.bf16.xpose.msra.mxu0 0
    %619 = vmatprep.subr.bf16.mxu0 0
    %620 = vmatpush1.bf16.xpose.msra.mxu0 0
    %621 = vmatprep.subr.bf16.mxu0 0
    %622 = vmatpush1.bf16.xpose.msra.mxu0 0
    %623 = vmatprep.subr.bf16.mxu0 0
    %624 = vmatpush1.bf16.xpose.msra.mxu0 0
    %625 = vmatprep.subr.bf16.mxu0 0
    %626 = vmatpush1.bf16.xpose.msra.mxu0 0
    %627 = vmatprep.subr.bf16.mxu0 0
    %628 = vmatpush1.bf16.xpose.msra.mxu0 0
    %629 = vmatprep.subr.bf16.mxu0 0
    %630 = vmatpush1.bf16.xpose.msra.mxu0 0
    %631 = vmatprep.subr.bf16.mxu0 0
    %632 = vmatpush1.bf16.xpose.msra.mxu0 0
    %633 = vmatprep.subr.bf16.mxu0 0
    %634 = vmatpush1.bf16.xpose.msra.mxu0 0
    %635 = vmatprep.mubr.bf16.mxu0 0
    %636 = vmatmul.mubr.bf16.gmra.mrb[0].mxu0 %v598
    %v637 = vpop.f32.mrb[0].mxu0
    %v638 = vadd.f32 0.0, %v637
    %v639 = vpop.f32.mrb[0].mxu0
    %v640 = vpop.f32.mrb[0].mxu0
    %v641 = vpop.f32.mrb[0].mxu0
    %642 = vdwg.mxu0
    %v643 = vmul.f32 %v588, 0.35355338
    %v644 = vmul.f32 %v638, 0.35355338
    %v645 = vsel %vm413, %v643, -1e+30
    %v646 = vsel %vm414, %v644, -1e+30
    %v647 = vsel %vm303, %v645, -inf
    %648 = vmax.xlane.f32.xlu0 %v647
    %v649 = vpop.xlane.xlu0 %648
    %v650 = vsel %vm303, %v646, -inf
    %651 = vmax.xlane.f32.xlu0 %v650
    %v652 = vpop.xlane.xlu0 %651
    %v653 = vsub.f32 %v645, %v649
    %v654 = vsub.f32 %v646, %v652
    %v655 = vmul.f32 %v653, 1.442695
    %v656 = vpow.pop %v655
    %v657 = vmul.f32 %v654, 1.442695
    %v658 = vpow.pop %v657
    %v659 = vsel %vm303, %v656, 0.0
    %660 = vadd.xlane.f32.xlu0 %v659
    %v661 = vpop.xlane.xlu0 %660
    %v662 = vsel %vm303, %v658, 0.0
    %663 = vadd.xlane.f32.xlu0 %v662
    %v664 = vpop.xlane.xlu0 %663
    %v665 = vrcp.pop %v661
    %v666 = vmul.f32 %v656, %v665
    %v667 = vrcp.pop %v664
    %v668 = vmul.f32 %v658, %v667
    %671 = vrot.lane.b32.xlu0 %v666, 8
    %v672 = vpop.permute.xlu0 %671
    %673 = vrot.lane.b32.xlu0 %v668, 8
    %v674 = vpop.permute.xlu0 %673
    %vm677 = vcmask 130112
    %678 = vst.msk [vmem:[#allocation11] sm:$0xff] %vm677, %v672
    %679 = vst.msk [vmem:[#allocation11 + $0x8] sm:$0xff] %vm677, %v674
    %v680 = vpack.c.bf16 %v666, %v666
    %v681 = vpack.c.bf16 %v668, %v668
    %682 = vrot.lane.b32.xlu0 %v298, 56
    %v683 = vpop.permute.xlu0 %682
    %v685 = vsel %vm303, %v680, 0
    %v688 = vsel %vm448, %v683, 0
    %690 = vmatprep.subr.bf16.mxu0 0
    %691 = vmatpush1.bf16.msra.mxu0 %v688
    %692 = vmatprep.subr.bf16.mxu0 0
    %693 = vmatpush1.bf16.msra.mxu0 0
    %694 = vmatprep.subr.bf16.mxu0 0
    %695 = vmatpush1.bf16.msra.mxu0 0
    %696 = vmatprep.subr.bf16.mxu0 0
    %697 = vmatpush1.bf16.msra.mxu0 0
    %698 = vmatprep.subr.bf16.mxu0 0
    %699 = vmatpush1.bf16.msra.mxu0 0
    %700 = vmatprep.subr.bf16.mxu0 0
    %701 = vmatpush1.bf16.msra.mxu0 0
    %702 = vmatprep.subr.bf16.mxu0 0
    %703 = vmatpush1.bf16.msra.mxu0 0
    %704 = vmatprep.subr.bf16.mxu0 0
    %705 = vmatpush1.bf16.msra.mxu0 0
    %706 = vmatprep.subr.bf16.mxu0 0
    %707 = vmatpush1.bf16.msra.mxu0 0
    %708 = vmatprep.subr.bf16.mxu0 0
    %709 = vmatpush1.bf16.msra.mxu0 0
    %710 = vmatprep.subr.bf16.mxu0 0
    %711 = vmatpush1.bf16.msra.mxu0 0
    %712 = vmatprep.subr.bf16.mxu0 0
    %713 = vmatpush1.bf16.msra.mxu0 0
    %714 = vmatprep.subr.bf16.mxu0 0
    %715 = vmatpush1.bf16.msra.mxu0 0
    %716 = vmatprep.subr.bf16.mxu0 0
    %717 = vmatpush1.bf16.msra.mxu0 0
    %718 = vmatprep.subr.bf16.mxu0 0
    %719 = vmatpush1.bf16.msra.mxu0 0
    %720 = vmatprep.subr.bf16.mxu0 0
    %721 = vmatpush1.bf16.msra.mxu0 0
    %722 = vmatprep.mubr.bf16.mxu0 0
    %723 = vmatmul.mubr.bf16.gmra.mrb[0].mxu0 %v685
    %v724 = vpop.f32.mrb[0].mxu0
    %v725 = vadd.f32 0.0, %v724
    %v726 = vpop.f32.mrb[0].mxu0
    %v727 = vpop.f32.mrb[0].mxu0
    %v728 = vpop.f32.mrb[0].mxu0
    %729 = vdwg.mxu0
    %730 = vrot.lane.b32.xlu0 %v299, 56
    %v731 = vpop.permute.xlu0 %730
    %v733 = vsel %vm303, %v681, 0
    %v736 = vsel %vm448, %v731, 0
    %738 = vmatprep.subr.bf16.mxu0 0
    %739 = vmatpush1.bf16.msra.mxu0 %v736
    %740 = vmatprep.subr.bf16.mxu0 0
    %741 = vmatpush1.bf16.msra.mxu0 0
    %742 = vmatprep.subr.bf16.mxu0 0
    %743 = vmatpush1.bf16.msra.mxu0 0
    %744 = vmatprep.subr.bf16.mxu0 0
    %745 = vmatpush1.bf16.msra.mxu0 0
    %746 = vmatprep.subr.bf16.mxu0 0
    %747 = vmatpush1.bf16.msra.mxu0 0
    %748 = vmatprep.subr.bf16.mxu0 0
    %749 = vmatpush1.bf16.msra.mxu0 0
    %750 = vmatprep.subr.bf16.mxu0 0
    %751 = vmatpush1.bf16.msra.mxu0 0
    %752 = vmatprep.subr.bf16.mxu0 0
    %753 = vmatpush1.bf16.msra.mxu0 0
    %754 = vmatprep.subr.bf16.mxu0 0
    %755 = vmatpush1.bf16.msra.mxu0 0
    %756 = vmatprep.subr.bf16.mxu0 0
    %757 = vmatpush1.bf16.msra.mxu0 0
    %758 = vmatprep.subr.bf16.mxu0 0
    %759 = vmatpush1.bf16.msra.mxu0 0
    %760 = vmatprep.subr.bf16.mxu0 0
    %761 = vmatpush1.bf16.msra.mxu0 0
    %762 = vmatprep.subr.bf16.mxu0 0
    %763 = vmatpush1.bf16.msra.mxu0 0
    %764 = vmatprep.subr.bf16.mxu0 0
    %765 = vmatpush1.bf16.msra.mxu0 0
    %766 = vmatprep.subr.bf16.mxu0 0
    %767 = vmatpush1.bf16.msra.mxu0 0
    %768 = vmatprep.subr.bf16.mxu0 0
    %769 = vmatpush1.bf16.msra.mxu0 0
    %770 = vmatprep.mubr.bf16.mxu0 0
    %771 = vmatmul.mubr.bf16.gmra.mrb[0].mxu0 %v733
    %v772 = vpop.f32.mrb[0].mxu0
    %v773 = vadd.f32 0.0, %v772
    %v774 = vpop.f32.mrb[0].mxu0
    %v775 = vpop.f32.mrb[0].mxu0
    %v776 = vpop.f32.mrb[0].mxu0
    %777 = vdwg.mxu0
    %v778 = vpack.c.bf16 %v773, %v725
    %v779 = vld [vmem:[%s8 + $0x8] sm:$0xff]
    %v780 = vpack.c.bf16 %v779, %v779
    %v782 = vsel %vm303, %v778, 0
    %v785 = vsel %vm448, %v780, 0
    %787 = vmatprep.subr.bf16.mxu0 0
    %788 = vmatpush1.bf16.msra.mxu0 %v785
    %789 = vmatprep.subr.bf16.mxu0 0
    %790 = vmatpush1.bf16.msra.mxu0 0
    %791 = vmatprep.subr.bf16.mxu0 0
    %792 = vmatpush1.bf16.msra.mxu0 0
    %793 = vmatprep.subr.bf16.mxu0 0
    %794 = vmatpush1.bf16.msra.mxu0 0
    %795 = vmatprep.subr.bf16.mxu0 0
    %796 = vmatpush1.bf16.msra.mxu0 0
    %797 = vmatprep.subr.bf16.mxu0 0
    %798 = vmatpush1.bf16.msra.mxu0 0
    %799 = vmatprep.subr.bf16.mxu0 0
    %800 = vmatpush1.bf16.msra.mxu0 0
    %801 = vmatprep.subr.bf16.mxu0 0
    %802 = vmatpush1.bf16.msra.mxu0 0
    %803 = vmatprep.subr.bf16.mxu0 0
    %804 = vmatpush1.bf16.msra.mxu0 0
    %805 = vmatprep.subr.bf16.mxu0 0
    %806 = vmatpush1.bf16.msra.mxu0 0
    %807 = vmatprep.subr.bf16.mxu0 0
    %808 = vmatpush1.bf16.msra.mxu0 0
    %809 = vmatprep.subr.bf16.mxu0 0
    %810 = vmatpush1.bf16.msra.mxu0 0
    %811 = vmatprep.subr.bf16.mxu0 0
    %812 = vmatpush1.bf16.msra.mxu0 0
    %813 = vmatprep.subr.bf16.mxu0 0
    %814 = vmatpush1.bf16.msra.mxu0 0
    %815 = vmatprep.subr.bf16.mxu0 0
    %816 = vmatpush1.bf16.msra.mxu0 0
    %817 = vmatprep.subr.bf16.mxu0 0
    %818 = vmatpush1.bf16.msra.mxu0 0
    %819 = vmatprep.mubr.bf16.mxu0 0
    %820 = vmatmul.mubr.bf16.gmra.mrb[0].mxu0 %v782
    %v821 = vpop.f32.mrb[0].mxu0
    %v822 = vadd.f32 0.0, %v821
    %v823 = vpop.f32.mrb[0].mxu0
    %v824 = vpop.f32.mrb[0].mxu0
    %v825 = vadd.f32 0.0, %v824
    %v826 = vpop.f32.mrb[0].mxu0
    %827 = vdwg.mxu0
    %v829 = vsel %vm303, %v540, 0
    %v832 = vsel %vm448, %v542, 0
    %834 = vmatprep.subr.bf16.mxu0 0
    %835 = vmatpush1.bf16.msra.mxu0 %v832
    %836 = vmatprep.subr.bf16.mxu0 0
    %837 = vmatpush1.bf16.msra.mxu0 0
    %838 = vmatprep.subr.bf16.mxu0 0
    %839 = vmatpush1.bf16.msra.mxu0 0
    %840 = vmatprep.subr.bf16.mxu0 0
    %841 = vmatpush1.bf16.msra.mxu0 0
    %842 = vmatprep.subr.bf16.mxu0 0
    %843 = vmatpush1.bf16.msra.mxu0 0
    %844 = vmatprep.subr.bf16.mxu0 0
    %845 = vmatpush1.bf16.msra.mxu0 0
    %846 = vmatprep.subr.bf16.mxu0 0
    %847 = vmatpush1.bf16.msra.mxu0 0
    %848 = vmatprep.subr.bf16.mxu0 0
    %849 = vmatpush1.bf16.msra.mxu0 0
    %850 = vmatprep.subr.bf16.mxu0 0
    %851 = vmatpush1.bf16.msra.mxu0 0
    %852 = vmatprep.subr.bf16.mxu0 0
    %853 = vmatpush1.bf16.msra.mxu0 0
    %854 = vmatprep.subr.bf16.mxu0 0
    %855 = vmatpush1.bf16.msra.mxu0 0
    %856 = vmatprep.subr.bf16.mxu0 0
    %857 = vmatpush1.bf16.msra.mxu0 0
    %858 = vmatprep.subr.bf16.mxu0 0
    %859 = vmatpush1.bf16.msra.mxu0 0
    %860 = vmatprep.subr.bf16.mxu0 0
    %861 = vmatpush1.bf16.msra.mxu0 0
    %862 = vmatprep.subr.bf16.mxu0 0
    %863 = vmatpush1.bf16.msra.mxu0 0
    %864 = vmatprep.subr.bf16.mxu0 0
    %865 = vmatpush1.bf16.msra.mxu0 0
    %866 = vmatprep.mubr.bf16.mxu0 0
    %867 = vmatmul.mubr.bf16.gmra.mrb[0].mxu0 %v829
    %v868 = vpop.f32.mrb[0].mxu0
    %v869 = vadd.f32 %v822, %v868
    %v870 = vpop.f32.mrb[0].mxu0
    %v871 = vpop.f32.mrb[0].mxu0
    %v872 = vadd.f32 %v825, %v871
    %v873 = vpop.f32.mrb[0].mxu0
    %874 = vdwg.mxu0
    %875 = vrot.lane.b32.xlu0 %v298, 112
    %v876 = vpop.permute.xlu0 %875
    %877 = vrot.lane.b32.xlu0 %v298, 80
    %v878 = vpop.permute.xlu0 %877
    %v880 = vsel %vm303, %v876, 0
    %v883 = vsel %vm303, %v878, 0
    %885 = vmatprep.subr.bf16.mxu0 0
    %886 = vmatpush1.bf16.xpose.msra.mxu0 %v883
    %887 = vmatprep.subr.bf16.mxu0 0
    %888 = vmatpush1.bf16.xpose.msra.mxu0 0
    %889 = vmatprep.subr.bf16.mxu0 0
    %890 = vmatpush1.bf16.xpose.msra.mxu0 0
    %891 = vmatprep.subr.bf16.mxu0 0
    %892 = vmatpush1.bf16.xpose.msra.mxu0 0
    %893 = vmatprep.subr.bf16.mxu0 0
    %894 = vmatpush1.bf16.xpose.msra.mxu0 0
    %895 = vmatprep.subr.bf16.mxu0 0
    %896 = vmatpush1.bf16.xpose.msra.mxu0 0
    %897 = vmatprep.subr.bf16.mxu0 0
    %898 = vmatpush1.bf16.xpose.msra.mxu0 0
    %899 = vmatprep.subr.bf16.mxu0 0
    %900 = vmatpush1.bf16.xpose.msra.mxu0 0
    %901 = vmatprep.subr.bf16.mxu0 0
    %902 = vmatpush1.bf16.xpose.msra.mxu0 0
    %903 = vmatprep.subr.bf16.mxu0 0
    %904 = vmatpush1.bf16.xpose.msra.mxu0 0
    %905 = vmatprep.subr.bf16.mxu0 0
    %906 = vmatpush1.bf16.xpose.msra.mxu0 0
    %907 = vmatprep.subr.bf16.mxu0 0
    %908 = vmatpush1.bf16.xpose.msra.mxu0 0
    %909 = vmatprep.subr.bf16.mxu0 0
    %910 = vmatpush1.bf16.xpose.msra.mxu0 0
    %911 = vmatprep.subr.bf16.mxu0 0
    %912 = vmatpush1.bf16.xpose.msra.mxu0 0
    %913 = vmatprep.subr.bf16.mxu0 0
    %914 = vmatpush1.bf16.xpose.msra.mxu0 0
    %915 = vmatprep.subr.bf16.mxu0 0
    %916 = vmatpush1.bf16.xpose.msra.mxu0 0
    %917 = vmatprep.mubr.bf16.mxu0 0
    %918 = vmatmul.mubr.bf16.gmra.mrb[0].mxu0 %v880
    %v919 = vpop.f32.mrb[0].mxu0
    %v920 = vadd.f32 0.0, %v919
    %v921 = vpop.f32.mrb[0].mxu0
    %v922 = vpop.f32.mrb[0].mxu0
    %v923 = vpop.f32.mrb[0].mxu0
    %924 = vdwg.mxu0
    %925 = vrot.lane.b32.xlu0 %v299, 112
    %v926 = vpop.permute.xlu0 %925
    %927 = vrot.lane.b32.xlu0 %v299, 80
    %v928 = vpop.permute.xlu0 %927
    %v930 = vsel %vm303, %v926, 0
    %v933 = vsel %vm303, %v928, 0
    %935 = vmatprep.subr.bf16.mxu0 0
    %936 = vmatpush1.bf16.xpose.msra.mxu0 %v933
    %937 = vmatprep.subr.bf16.mxu0 0
    %938 = vmatpush1.bf16.xpose.msra.mxu0 0
    %939 = vmatprep.subr.bf16.mxu0 0
    %940 = vmatpush1.bf16.xpose.msra.mxu0 0
    %941 = vmatprep.subr.bf16.mxu0 0
    %942 = vmatpush1.bf16.xpose.msra.mxu0 0
    %943 = vmatprep.subr.bf16.mxu0 0
    %944 = vmatpush1.bf16.xpose.msra.mxu0 0
    %945 = vmatprep.subr.bf16.mxu0 0
    %946 = vmatpush1.bf16.xpose.msra.mxu0 0
    %947 = vmatprep.subr.bf16.mxu0 0
    %948 = vmatpush1.bf16.xpose.msra.mxu0 0
    %949 = vmatprep.subr.bf16.mxu0 0
    %950 = vmatpush1.bf16.xpose.msra.mxu0 0
    %951 = vmatprep.subr.bf16.mxu0 0
    %952 = vmatpush1.bf16.xpose.msra.mxu0 0
    %953 = vmatprep.subr.bf16.mxu0 0
    %954 = vmatpush1.bf16.xpose.msra.mxu0 0
    %955 = vmatprep.subr.bf16.mxu0 0
    %956 = vmatpush1.bf16.xpose.msra.mxu0 0
    %957 = vmatprep.subr.bf16.mxu0 0
    %958 = vmatpush1.bf16.xpose.msra.mxu0 0
    %959 = vmatprep.subr.bf16.mxu0 0
    %960 = vmatpush1.bf16.xpose.msra.mxu0 0
    %961 = vmatprep.subr.bf16.mxu0 0
    %962 = vmatpush1.bf16.xpose.msra.mxu0 0
    %963 = vmatprep.subr.bf16.mxu0 0
    %964 = vmatpush1.bf16.xpose.msra.mxu0 0
    %965 = vmatprep.subr.bf16.mxu0 0
    %966 = vmatpush1.bf16.xpose.msra.mxu0 0
    %967 = vmatprep.mubr.bf16.mxu0 0
    %968 = vmatmul.mubr.bf16.gmra.mrb[0].mxu0 %v930
    %v969 = vpop.f32.mrb[0].mxu0
    %v970 = vadd.f32 0.0, %v969
    %v971 = vpop.f32.mrb[0].mxu0
    %v972 = vpop.f32.mrb[0].mxu0
    %v973 = vpop.f32.mrb[0].mxu0
    %974 = vdwg.mxu0
    %v975 = vmul.f32 %v920, 0.35355338
    %v976 = vmul.f32 %v970, 0.35355338
    %v977 = vsel %vm413, %v975, -1e+30
    %v978 = vsel %vm414, %v976, -1e+30
    %v979 = vsel %vm303, %v977, -inf
    %980 = vmax.xlane.f32.xlu0 %v979
    %v981 = vpop.xlane.xlu0 %980
    %v982 = vsel %vm303, %v978, -inf
    %983 = vmax.xlane.f32.xlu0 %v982
    %v984 = vpop.xlane.xlu0 %983
    %v985 = vsub.f32 %v977, %v981
    %v986 = vsub.f32 %v978, %v984
    %v987 = vmul.f32 %v985, 1.442695
    %v988 = vpow.pop %v987
    %v989 = vmul.f32 %v986, 1.442695
    %v990 = vpow.pop %v989
    %v991 = vsel %vm303, %v988, 0.0
    %992 = vadd.xlane.f32.xlu0 %v991
    %v993 = vpop.xlane.xlu0 %992
    %v994 = vsel %vm303, %v990, 0.0
    %995 = vadd.xlane.f32.xlu0 %v994
    %v996 = vpop.xlane.xlu0 %995
    %v997 = vrcp.pop %v993
    %v998 = vmul.f32 %v988, %v997
    %v999 = vrcp.pop %v996
    %v1000 = vmul.f32 %v990, %v999
    %1003 = vrot.lane.b32.xlu0 %v998, 16
    %v1004 = vpop.permute.xlu0 %1003
    %1005 = vrot.lane.b32.xlu0 %v1000, 16
    %v1006 = vpop.permute.xlu0 %1005
    %vm1009 = vcmask 195712
    %1010 = vst.msk [vmem:[#allocation11] sm:$0xff] %vm1009, %v1004
    %1011 = vst.msk [vmem:[#allocation11 + $0x8] sm:$0xff] %vm1009, %v1006
    %v1012 = vpack.c.bf16 %v998, %v998
    %v1013 = vpack.c.bf16 %v1000, %v1000
    %1014 = vrot.lane.b32.xlu0 %v298, 48
    %v1015 = vpop.permute.xlu0 %1014
    %v1017 = vsel %vm303, %v1012, 0
    %v1020 = vsel %vm448, %v1015, 0
    %1022 = vmatprep.subr.bf16.mxu0 0
    %1023 = vmatpush1.bf16.msra.mxu0 %v1020
    %1024 = vmatprep.subr.bf16.mxu0 0
    %1025 = vmatpush1.bf16.msra.mxu0 0
    %1026 = vmatprep.subr.bf16.mxu0 0
    %1027 = vmatpush1.bf16.msra.mxu0 0
    %1028 = vmatprep.subr.bf16.mxu0 0
    %1029 = vmatpush1.bf16.msra.mxu0 0
    %1030 = vmatprep.subr.bf16.mxu0 0
    %1031 = vmatpush1.bf16.msra.mxu0 0
    %1032 = vmatprep.subr.bf16.mxu0 0
    %1033 = vmatpush1.bf16.msra.mxu0 0
    %1034 = vmatprep.subr.bf16.mxu0 0
    %1035 = vmatpush1.bf16.msra.mxu0 0
    %1036 = vmatprep.subr.bf16.mxu0 0
    %1037 = vmatpush1.bf16.msra.mxu0 0
    %1038 = vmatprep.subr.bf16.mxu0 0
    %1039 = vmatpush1.bf16.msra.mxu0 0
    %1040 = vmatprep.subr.bf16.mxu0 0
    %1041 = vmatpush1.bf16.msra.mxu0 0
    %1042 = vmatprep.subr.bf16.mxu0 0
    %1043 = vmatpush1.bf16.msra.mxu0 0
    %1044 = vmatprep.subr.bf16.mxu0 0
    %1045 = vmatpush1.bf16.msra.mxu0 0
    %1046 = vmatprep.subr.bf16.mxu0 0
    %1047 = vmatpush1.bf16.msra.mxu0 0
    %1048 = vmatprep.subr.bf16.mxu0 0
    %1049 = vmatpush1.bf16.msra.mxu0 0
    %1050 = vmatprep.subr.bf16.mxu0 0
    %1051 = vmatpush1.bf16.msra.mxu0 0
    %1052 = vmatprep.subr.bf16.mxu0 0
    %1053 = vmatpush1.bf16.msra.mxu0 0
    %1054 = vmatprep.mubr.bf16.mxu0 0
    %1055 = vmatmul.mubr.bf16.gmra.mrb[0].mxu0 %v1017
    %v1056 = vpop.f32.mrb[0].mxu0
    %v1057 = vadd.f32 0.0, %v1056
    %v1058 = vpop.f32.mrb[0].mxu0
    %v1059 = vpop.f32.mrb[0].mxu0
    %v1060 = vpop.f32.mrb[0].mxu0
    %1061 = vdwg.mxu0
    %1062 = vrot.lane.b32.xlu0 %v299, 48
    %v1063 = vpop.permute.xlu0 %1062
    %v1065 = vsel %vm303, %v1013, 0
    %v1068 = vsel %vm448, %v1063, 0
    %1070 = vmatprep.subr.bf16.mxu0 0
    %1071 = vmatpush1.bf16.msra.mxu0 %v1068
    %1072 = vmatprep.subr.bf16.mxu0 0
    %1073 = vmatpush1.bf16.msra.mxu0 0
    %1074 = vmatprep.subr.bf16.mxu0 0
    %1075 = vmatpush1.bf16.msra.mxu0 0
    %1076 = vmatprep.subr.bf16.mxu0 0
    %1077 = vmatpush1.bf16.msra.mxu0 0
    %1078 = vmatprep.subr.bf16.mxu0 0
    %1079 = vmatpush1.bf16.msra.mxu0 0
    %1080 = vmatprep.subr.bf16.mxu0 0
    %1081 = vmatpush1.bf16.msra.mxu0 0
    %1082 = vmatprep.subr.bf16.mxu0 0
    %1083 = vmatpush1.bf16.msra.mxu0 0
    %1084 = vmatprep.subr.bf16.mxu0 0
    %1085 = vmatpush1.bf16.msra.mxu0 0
    %1086 = vmatprep.subr.bf16.mxu0 0
    %1087 = vmatpush1.bf16.msra.mxu0 0
    %1088 = vmatprep.subr.bf16.mxu0 0
    %1089 = vmatpush1.bf16.msra.mxu0 0
    %1090 = vmatprep.subr.bf16.mxu0 0
    %1091 = vmatpush1.bf16.msra.mxu0 0
    %1092 = vmatprep.subr.bf16.mxu0 0
    %1093 = vmatpush1.bf16.msra.mxu0 0
    %1094 = vmatprep.subr.bf16.mxu0 0
    %1095 = vmatpush1.bf16.msra.mxu0 0
    %1096 = vmatprep.subr.bf16.mxu0 0
    %1097 = vmatpush1.bf16.msra.mxu0 0
    %1098 = vmatprep.subr.bf16.mxu0 0
    %1099 = vmatpush1.bf16.msra.mxu0 0
    %1100 = vmatprep.subr.bf16.mxu0 0
    %1101 = vmatpush1.bf16.msra.mxu0 0
    %1102 = vmatprep.mubr.bf16.mxu0 0
    %1103 = vmatmul.mubr.bf16.gmra.mrb[0].mxu0 %v1065
    %v1104 = vpop.f32.mrb[0].mxu0
    %v1105 = vadd.f32 0.0, %v1104
    %v1106 = vpop.f32.mrb[0].mxu0
    %v1107 = vpop.f32.mrb[0].mxu0
    %v1108 = vpop.f32.mrb[0].mxu0
    %1109 = vdwg.mxu0
    %v1110 = vpack.c.bf16 %v1105, %v1057
    %v1111 = vld [vmem:[%s8 + $0x10] sm:$0xff]
    %v1112 = vpack.c.bf16 %v1111, %v1111
    %v1114 = vsel %vm303, %v1110, 0
    %v1117 = vsel %vm448, %v1112, 0
    %1119 = vmatprep.subr.bf16.mxu0 0
    %1120 = vmatpush1.bf16.msra.mxu0 %v1117
    %1121 = vmatprep.subr.bf16.mxu0 0
    %1122 = vmatpush1.bf16.msra.mxu0 0
    %1123 = vmatprep.subr.bf16.mxu0 0
    %1124 = vmatpush1.bf16.msra.mxu0 0
    %1125 = vmatprep.subr.bf16.mxu0 0
    %1126 = vmatpush1.bf16.msra.mxu0 0
    %1127 = vmatprep.subr.bf16.mxu0 0
    %1128 = vmatpush1.bf16.msra.mxu0 0
    %1129 = vmatprep.subr.bf16.mxu0 0
    %1130 = vmatpush1.bf16.msra.mxu0 0
    %1131 = vmatprep.subr.bf16.mxu0 0
    %1132 = vmatpush1.bf16.msra.mxu0 0
    %1133 = vmatprep.subr.bf16.mxu0 0
    %1134 = vmatpush1.bf16.msra.mxu0 0
    %1135 = vmatprep.subr.bf16.mxu0 0
    %1136 = vmatpush1.bf16.msra.mxu0 0
    %1137 = vmatprep.subr.bf16.mxu0 0
    %1138 = vmatpush1.bf16.msra.mxu0 0
    %1139 = vmatprep.subr.bf16.mxu0 0
    %1140 = vmatpush1.bf16.msra.mxu0 0
    %1141 = vmatprep.subr.bf16.mxu0 0
    %1142 = vmatpush1.bf16.msra.mxu0 0
    %1143 = vmatprep.subr.bf16.mxu0 0
    %1144 = vmatpush1.bf16.msra.mxu0 0
    %1145 = vmatprep.subr.bf16.mxu0 0
    %1146 = vmatpush1.bf16.msra.mxu0 0
    %1147 = vmatprep.subr.bf16.mxu0 0
    %1148 = vmatpush1.bf16.msra.mxu0 0
    %1149 = vmatprep.subr.bf16.mxu0 0
    %1150 = vmatpush1.bf16.msra.mxu0 0
    %1151 = vmatprep.mubr.bf16.mxu0 0
    %1152 = vmatmul.mubr.bf16.gmra.mrb[0].mxu0 %v1114
    %v1153 = vpop.f32.mrb[0].mxu0
    %v1154 = vadd.f32 0.0, %v1153
    %v1155 = vpop.f32.mrb[0].mxu0
    %v1156 = vpop.f32.mrb[0].mxu0
    %v1157 = vadd.f32 0.0, %v1156
    %v1158 = vpop.f32.mrb[0].mxu0
    %1159 = vdwg.mxu0
    %v1160 = vadd.f32 %v869, %v1154
    %v1161 = vadd.f32 %v872, %v1157
    %1162 = vrot.lane.b32.xlu0 %v298, 104
    %v1163 = vpop.permute.xlu0 %1162
    %1164 = vrot.lane.b32.xlu0 %v298, 72
    %v1165 = vpop.permute.xlu0 %1164
    %v1167 = vsel %vm303, %v1163, 0
    %v1170 = vsel %vm303, %v1165, 0
    %1172 = vmatprep.subr.bf16.mxu0 0
    %1173 = vmatpush1.bf16.xpose.msra.mxu0 %v1170
    %1174 = vmatprep.subr.bf16.mxu0 0
    %1175 = vmatpush1.bf16.xpose.msra.mxu0 0
    %1176 = vmatprep.subr.bf16.mxu0 0
    %1177 = vmatpush1.bf16.xpose.msra.mxu0 0
    %1178 = vmatprep.subr.bf16.mxu0 0
    %1179 = vmatpush1.bf16.xpose.msra.mxu0 0
    %1180 = vmatprep.subr.bf16.mxu0 0
    %1181 = vmatpush1.bf16.xpose.msra.mxu0 0
    %1182 = vmatprep.subr.bf16.mxu0 0
    %1183 = vmatpush1.bf16.xpose.msra.mxu0 0
    %1184 = vmatprep.subr.bf16.mxu0 0
    %1185 = vmatpush1.bf16.xpose.msra.mxu0 0
    %1186 = vmatprep.subr.bf16.mxu0 0
    %1187 = vmatpush1.bf16.xpose.msra.mxu0 0
    %1188 = vmatprep.subr.bf16.mxu0 0
    %1189 = vmatpush1.bf16.xpose.msra.mxu0 0
    %1190 = vmatprep.subr.bf16.mxu0 0
    %1191 = vmatpush1.bf16.xpose.msra.mxu0 0
    %1192 = vmatprep.subr.bf16.mxu0 0
    %1193 = vmatpush1.bf16.xpose.msra.mxu0 0
    %1194 = vmatprep.subr.bf16.mxu0 0
    %1195 = vmatpush1.bf16.xpose.msra.mxu0 0
    %1196 = vmatprep.subr.bf16.mxu0 0
    %1197 = vmatpush1.bf16.xpose.msra.mxu0 0
    %1198 = vmatprep.subr.bf16.mxu0 0
    %1199 = vmatpush1.bf16.xpose.msra.mxu0 0
    %1200 = vmatprep.subr.bf16.mxu0 0
    %1201 = vmatpush1.bf16.xpose.msra.mxu0 0
    %1202 = vmatprep.subr.bf16.mxu0 0
    %1203 = vmatpush1.bf16.xpose.msra.mxu0 0
    %1204 = vmatprep.mubr.bf16.mxu0 0
    %1205 = vmatmul.mubr.bf16.gmra.mrb[0].mxu0 %v1167
    %v1206 = vpop.f32.mrb[0].mxu0
    %v1207 = vadd.f32 0.0, %v1206
    %v1208 = vpop.f32.mrb[0].mxu0
    %v1209 = vpop.f32.mrb[0].mxu0
    %v1210 = vpop.f32.mrb[0].mxu0
    %1211 = vdwg.mxu0
    %1212 = vrot.lane.b32.xlu0 %v299, 104
    %v1213 = vpop.permute.xlu0 %1212
    %1214 = vrot.lane.b32.xlu0 %v299, 72
    %v1215 = vpop.permute.xlu0 %1214
    %v1217 = vsel %vm303, %v1213, 0
    %v1220 = vsel %vm303, %v1215, 0
    %1222 = vmatprep.subr.bf16.mxu0 0
    %1223 = vmatpush1.bf16.xpose.msra.mxu0 %v1220
    %1224 = vmatprep.subr.bf16.mxu0 0
    %1225 = vmatpush1.bf16.xpose.msra.mxu0 0
    %1226 = vmatprep.subr.bf16.mxu0 0
    %1227 = vmatpush1.bf16.xpose.msra.mxu0 0
    %1228 = vmatprep.subr.bf16.mxu0 0
    %1229 = vmatpush1.bf16.xpose.msra.mxu0 0
    %1230 = vmatprep.subr.bf16.mxu0 0
    %1231 = vmatpush1.bf16.xpose.msra.mxu0 0
    %1232 = vmatprep.subr.bf16.mxu0 0
    %1233 = vmatpush1.bf16.xpose.msra.mxu0 0
    %1234 = vmatprep.subr.bf16.mxu0 0
    %1235 = vmatpush1.bf16.xpose.msra.mxu0 0
    %1236 = vmatprep.subr.bf16.mxu0 0
    %1237 = vmatpush1.bf16.xpose.msra.mxu0 0
    %1238 = vmatprep.subr.bf16.mxu0 0
    %1239 = vmatpush1.bf16.xpose.msra.mxu0 0
    %1240 = vmatprep.subr.bf16.mxu0 0
    %1241 = vmatpush1.bf16.xpose.msra.mxu0 0
    %1242 = vmatprep.subr.bf16.mxu0 0
    %1243 = vmatpush1.bf16.xpose.msra.mxu0 0
    %1244 = vmatprep.subr.bf16.mxu0 0
    %1245 = vmatpush1.bf16.xpose.msra.mxu0 0
    %1246 = vmatprep.subr.bf16.mxu0 0
    %1247 = vmatpush1.bf16.xpose.msra.mxu0 0
    %1248 = vmatprep.subr.bf16.mxu0 0
    %1249 = vmatpush1.bf16.xpose.msra.mxu0 0
    %1250 = vmatprep.subr.bf16.mxu0 0
    %1251 = vmatpush1.bf16.xpose.msra.mxu0 0
    %1252 = vmatprep.subr.bf16.mxu0 0
    %1253 = vmatpush1.bf16.xpose.msra.mxu0 0
    %1254 = vmatprep.mubr.bf16.mxu0 0
    %1255 = vmatmul.mubr.bf16.gmra.mrb[0].mxu0 %v1217
    %v1256 = vpop.f32.mrb[0].mxu0
    %v1257 = vadd.f32 0.0, %v1256
    %v1258 = vpop.f32.mrb[0].mxu0
    %v1259 = vpop.f32.mrb[0].mxu0
    %v1260 = vpop.f32.mrb[0].mxu0
    %1261 = vdwg.mxu0
    %v1262 = vmul.f32 %v1207, 0.35355338
    %v1263 = vmul.f32 %v1257, 0.35355338
    %v1264 = vsel %vm413, %v1262, -1e+30
    %v1265 = vsel %vm414, %v1263, -1e+30
    %v1266 = vsel %vm303, %v1264, -inf
    %1267 = vmax.xlane.f32.xlu0 %v1266
    %v1268 = vpop.xlane.xlu0 %1267
    %v1269 = vsel %vm303, %v1265, -inf
    %1270 = vmax.xlane.f32.xlu0 %v1269
    %v1271 = vpop.xlane.xlu0 %1270
    %v1272 = vsub.f32 %v1264, %v1268
    %v1273 = vsub.f32 %v1265, %v1271
    %v1274 = vmul.f32 %v1272, 1.442695
    %v1275 = vpow.pop %v1274
    %v1276 = vmul.f32 %v1273, 1.442695
    %v1277 = vpow.pop %v1276
    %v1278 = vsel %vm303, %v1275, 0.0
    %1279 = vadd.xlane.f32.xlu0 %v1278
    %v1280 = vpop.xlane.xlu0 %1279
    %v1281 = vsel %vm303, %v1277, 0.0
    %1282 = vadd.xlane.f32.xlu0 %v1281
    %v1283 = vpop.xlane.xlu0 %1282
    %v1284 = vrcp.pop %v1280
    %v1285 = vmul.f32 %v1275, %v1284
    %v1286 = vrcp.pop %v1283
    %v1287 = vmul.f32 %v1277, %v1286
    %1290 = vrot.lane.b32.xlu0 %v1285, 24
    %v1291 = vpop.permute.xlu0 %1290
    %1292 = vrot.lane.b32.xlu0 %v1287, 24
    %v1293 = vpop.permute.xlu0 %1292
    %vm1296 = vcmask 261312
    %1297 = vst.msk [vmem:[#allocation11] sm:$0xff] %vm1296, %v1291
    %1298 = vst.msk [vmem:[#allocation11 + $0x8] sm:$0xff] %vm1296, %v1293
    %v1299 = vpack.c.bf16 %v1285, %v1285
    %v1300 = vpack.c.bf16 %v1287, %v1287
    %1301 = vrot.lane.b32.xlu0 %v298, 40
    %v1302 = vpop.permute.xlu0 %1301
    %v1304 = vsel %vm303, %v1299, 0
    %v1307 = vsel %vm448, %v1302, 0
    %1309 = vmatprep.subr.bf16.mxu0 0
    %1310 = vmatpush1.bf16.msra.mxu0 %v1307
    %1311 = vmatprep.subr.bf16.mxu0 0
    %1312 = vmatpush1.bf16.msra.mxu0 0
    %1313 = vmatprep.subr.bf16.mxu0 0
    %1314 = vmatpush1.bf16.msra.mxu0 0
    %1315 = vmatprep.subr.bf16.mxu0 0
    %1316 = vmatpush1.bf16.msra.mxu0 0
    %1317 = vmatprep.subr.bf16.mxu0 0
    %1318 = vmatpush1.bf16.msra.mxu0 0
    %1319 = vmatprep.subr.bf16.mxu0 0
    %1320 = vmatpush1.bf16.msra.mxu0 0
    %1321 = vmatprep.subr.bf16.mxu0 0
    %1322 = vmatpush1.bf16.msra.mxu0 0
    %1323 = vmatprep.subr.bf16.mxu0 0
    %1324 = vmatpush1.bf16.msra.mxu0 0
    %1325 = vmatprep.subr.bf16.mxu0 0
    %1326 = vmatpush1.bf16.msra.mxu0 0
    %1327 = vmatprep.subr.bf16.mxu0 0
    %1328 = vmatpush1.bf16.msra.mxu0 0
    %1329 = vmatprep.subr.bf16.mxu0 0
    %1330 = vmatpush1.bf16.msra.mxu0 0
    %1331 = vmatprep.subr.bf16.mxu0 0
    %1332 = vmatpush1.bf16.msra.mxu0 0
    %1333 = vmatprep.subr.bf16.mxu0 0
    %1334 = vmatpush1.bf16.msra.mxu0 0
    %1335 = vmatprep.subr.bf16.mxu0 0
    %1336 = vmatpush1.bf16.msra.mxu0 0
    %1337 = vmatprep.subr.bf16.mxu0 0
    %1338 = vmatpush1.bf16.msra.mxu0 0
    %1339 = vmatprep.subr.bf16.mxu0 0
    %1340 = vmatpush1.bf16.msra.mxu0 0
    %1341 = vmatprep.mubr.bf16.mxu0 0
    %1342 = vmatmul.mubr.bf16.gmra.mrb[0].mxu0 %v1304
    %v1343 = vpop.f32.mrb[0].mxu0
    %v1344 = vadd.f32 0.0, %v1343
    %v1345 = vpop.f32.mrb[0].mxu0
    %v1346 = vpop.f32.mrb[0].mxu0
    %v1347 = vpop.f32.mrb[0].mxu0
    %1348 = vdwg.mxu0
    %1349 = vrot.lane.b32.xlu0 %v299, 40
    %v1350 = vpop.permute.xlu0 %1349
    %v1352 = vsel %vm303, %v1300, 0
    %v1355 = vsel %vm448, %v1350, 0
    %1357 = vmatprep.subr.bf16.mxu0 0
    %1358 = vmatpush1.bf16.msra.mxu0 %v1355
    %1359 = vmatprep.subr.bf16.mxu0 0
    %1360 = vmatpush1.bf16.msra.mxu0 0
    %1361 = vmatprep.subr.bf16.mxu0 0
    %1362 = vmatpush1.bf16.msra.mxu0 0
    %1363 = vmatprep.subr.bf16.mxu0 0
    %1364 = vmatpush1.bf16.msra.mxu0 0
    %1365 = vmatprep.subr.bf16.mxu0 0
    %1366 = vmatpush1.bf16.msra.mxu0 0
    %1367 = vmatprep.subr.bf16.mxu0 0
    %1368 = vmatpush1.bf16.msra.mxu0 0
    %1369 = vmatprep.subr.bf16.mxu0 0
    %1370 = vmatpush1.bf16.msra.mxu0 0
    %1371 = vmatprep.subr.bf16.mxu0 0
    %1372 = vmatpush1.bf16.msra.mxu0 0
    %1373 = vmatprep.subr.bf16.mxu0 0
    %1374 = vmatpush1.bf16.msra.mxu0 0
    %1375 = vmatprep.subr.bf16.mxu0 0
    %1376 = vmatpush1.bf16.msra.mxu0 0
    %1377 = vmatprep.subr.bf16.mxu0 0
    %1378 = vmatpush1.bf16.msra.mxu0 0
    %1379 = vmatprep.subr.bf16.mxu0 0
    %1380 = vmatpush1.bf16.msra.mxu0 0
    %1381 = vmatprep.subr.bf16.mxu0 0
    %1382 = vmatpush1.bf16.msra.mxu0 0
    %1383 = vmatprep.subr.bf16.mxu0 0
    %1384 = vmatpush1.bf16.msra.mxu0 0
    %1385 = vmatprep.subr.bf16.mxu0 0
    %1386 = vmatpush1.bf16.msra.mxu0 0
    %1387 = vmatprep.subr.bf16.mxu0 0
    %1388 = vmatpush1.bf16.msra.mxu0 0
    %1389 = vmatprep.mubr.bf16.mxu0 0
    %1390 = vmatmul.mubr.bf16.gmra.mrb[0].mxu0 %v1352
    %v1391 = vpop.f32.mrb[0].mxu0
    %v1392 = vadd.f32 0.0, %v1391
    %v1393 = vpop.f32.mrb[0].mxu0
    %v1394 = vpop.f32.mrb[0].mxu0
    %v1395 = vpop.f32.mrb[0].mxu0
    %1396 = vdwg.mxu0
    %v1397 = vpack.c.bf16 %v1392, %v1344
    %v1398 = vld [vmem:[%s8 + $0x18] sm:$0xff]
    %v1399 = vpack.c.bf16 %v1398, %v1398
    %v1401 = vsel %vm303, %v1397, 0
    %v1404 = vsel %vm448, %v1399, 0
    %1406 = vmatprep.subr.bf16.mxu0 0
    %1407 = vmatpush1.bf16.msra.mxu0 %v1404
    %1408 = vmatprep.subr.bf16.mxu0 0
    %1409 = vmatpush1.bf16.msra.mxu0 0
    %1410 = vmatprep.subr.bf16.mxu0 0
    %1411 = vmatpush1.bf16.msra.mxu0 0
    %1412 = vmatprep.subr.bf16.mxu0 0
    %1413 = vmatpush1.bf16.msra.mxu0 0
    %1414 = vmatprep.subr.bf16.mxu0 0
    %1415 = vmatpush1.bf16.msra.mxu0 0
    %1416 = vmatprep.subr.bf16.mxu0 0
    %1417 = vmatpush1.bf16.msra.mxu0 0
    %1418 = vmatprep.subr.bf16.mxu0 0
    %1419 = vmatpush1.bf16.msra.mxu0 0
    %1420 = vmatprep.subr.bf16.mxu0 0
    %1421 = vmatpush1.bf16.msra.mxu0 0
    %1422 = vmatprep.subr.bf16.mxu0 0
    %1423 = vmatpush1.bf16.msra.mxu0 0
    %1424 = vmatprep.subr.bf16.mxu0 0
    %1425 = vmatpush1.bf16.msra.mxu0 0
    %1426 = vmatprep.subr.bf16.mxu0 0
    %1427 = vmatpush1.bf16.msra.mxu0 0
    %1428 = vmatprep.subr.bf16.mxu0 0
    %1429 = vmatpush1.bf16.msra.mxu0 0
    %1430 = vmatprep.subr.bf16.mxu0 0
    %1431 = vmatpush1.bf16.msra.mxu0 0
    %1432 = vmatprep.subr.bf16.mxu0 0
    %1433 = vmatpush1.bf16.msra.mxu0 0
    %1434 = vmatprep.subr.bf16.mxu0 0
    %1435 = vmatpush1.bf16.msra.mxu0 0
    %1436 = vmatprep.subr.bf16.mxu0 0
    %1437 = vmatpush1.bf16.msra.mxu0 0
    %1438 = vmatprep.mubr.bf16.mxu0 0
    %1439 = vmatmul.mubr.bf16.gmra.mrb[0].mxu0 %v1401
    %v1440 = vpop.f32.mrb[0].mxu0
    %v1441 = vadd.f32 0.0, %v1440
    %v1442 = vpop.f32.mrb[0].mxu0
    %v1443 = vpop.f32.mrb[0].mxu0
    %v1444 = vadd.f32 0.0, %v1443
    %v1445 = vpop.f32.mrb[0].mxu0
    %1446 = vdwg.mxu0
    %v1447 = vadd.f32 %v1160, %v1441
    %v1448 = vadd.f32 %v1161, %v1444
    %v1449 = vld [vmem:[%s9] sm:$0x1]
    %v1451 = vlaneseq
    %v1452 = vshrl.u32 %v1451, 7
    %v1453 = vsub.s32 0, %v1452
    %v1454 = vrot.slane %v1449, %v1453
    %v1456 = vadd.f32 %v1447, %v1454
    %v1457 = vadd.f32 %v1448, %v1454
    %v1458 = vadd.f32 %v188, %v1456
    %v1459 = vadd.f32 %v191, %v1457
    %v1460 = vld [vmem:[%s10] sm:$0x1]
    %v1461 = vld [vmem:[%s11] sm:$0x1]
    %v1462 = vsel %vm196, %v1458, 0.0
    %1463 = vadd.xlane.f32.xlu0 %v1462
    %v1464 = vpop.xlane.xlu0 %1463
    %v1465 = vsel %vm196, %v1459, 0.0
    %1466 = vadd.xlane.f32.xlu0 %v1465
    %v1467 = vpop.xlane.xlu0 %1466
    %v1468 = vmul.f32 %v1464, %v203
    %v1469 = vmul.f32 %v1467, %v203
    %v1470 = vsub.f32 %v1458, %v1468
    %v1471 = vsub.f32 %v1459, %v1469
    %v1472 = vmul.f32 %v1470, %v1470
    %v1473 = vmul.f32 %v1471, %v1471
    %v1474 = vsel %vm196, %v1472, 0.0
    %1475 = vadd.xlane.f32.xlu0 %v1474
    %v1476 = vpop.xlane.xlu0 %1475
    %v1477 = vsel %vm196, %v1473, 0.0
    %1478 = vadd.xlane.f32.xlu0 %v1477
    %v1479 = vpop.xlane.xlu0 %1478
    %v1480 = vmul.f32 %v1476, %v203
    %v1481 = vmul.f32 %v1479, %v203
    %v1482 = vadd.f32 %v1480, 1e-05
    %v1483 = vadd.f32 %v1481, 1e-05
    %v1484 = vrsqrt.pop %v1482
    %v1485 = vrsqrt.pop %v1483
    %v1486 = vmul.f32 %v1470, %v1484
    %v1487 = vmul.f32 %v1471, %v1485
    %v1489 = vlaneseq
    %v1490 = vshrl.u32 %v1489, 7
    %v1491 = vsub.s32 0, %v1490
    %v1492 = vrot.slane %v1460, %v1491
    %v1494 = vmul.f32 %v1486, %v1492
    %v1495 = vmul.f32 %v1487, %v1492
    %v1497 = vlaneseq
    %v1498 = vshrl.u32 %v1497, 7
    %v1499 = vsub.s32 0, %v1498
    %v1500 = vrot.slane %v1461, %v1499
    %v1502 = vadd.f32 %v1494, %v1500
    %v1503 = vadd.f32 %v1495, %v1500
    %v1504 = vpack.c.bf16 %v1503, %v1502
    %v1505 = vld [vmem:[%s12] sm:$0xff]
    %v1506 = vld [vmem:[%s12 + $0x8] sm:$0xff]
    %v1507 = vld [vmem:[%s12 + $0x10] sm:$0xff]
    %v1508 = vld [vmem:[%s12 + $0x18] sm:$0xff]
    %v1509 = vpack.c.bf16 %v1506, %v1505
    %v1510 = vpack.c.bf16 %v1508, %v1507
    %v1511 = vld [vmem:[%s13] sm:$0x1]
    %v1513 = vlaneseq
    %v1514 = vshrl.u32 %v1513, 7
    %v1515 = vsub.s32 0, %v1514
    %v1516 = vrot.slane %v1511, %v1515
    %v1519 = vsel %vm196, %v1504, 0
    %1521 = vmatprep.subr.bf16.mxu0 0
    %1522 = vmatpush1.bf16.msra.mxu0 %v1509
    %1523 = vmatprep.subr.bf16.mxu0 0
    %1524 = vmatpush1.bf16.msra.mxu0 %v1510
    %1525 = vmatprep.subr.bf16.mxu0 0
    %1526 = vmatpush1.bf16.msra.mxu0 0
    %1527 = vmatprep.subr.bf16.mxu0 0
    %1528 = vmatpush1.bf16.msra.mxu0 0
    %1529 = vmatprep.subr.bf16.mxu0 0
    %1530 = vmatpush1.bf16.msra.mxu0 0
    %1531 = vmatprep.subr.bf16.mxu0 0
    %1532 = vmatpush1.bf16.msra.mxu0 0
    %1533 = vmatprep.subr.bf16.mxu0 0
    %1534 = vmatpush1.bf16.msra.mxu0 0
    %1535 = vmatprep.subr.bf16.mxu0 0
    %1536 = vmatpush1.bf16.msra.mxu0 0
    %1537 = vmatprep.subr.bf16.mxu0 0
    %1538 = vmatpush1.bf16.msra.mxu0 0
    %1539 = vmatprep.subr.bf16.mxu0 0
    %1540 = vmatpush1.bf16.msra.mxu0 0
    %1541 = vmatprep.subr.bf16.mxu0 0
    %1542 = vmatpush1.bf16.msra.mxu0 0
    %1543 = vmatprep.subr.bf16.mxu0 0
    %1544 = vmatpush1.bf16.msra.mxu0 0
    %1545 = vmatprep.subr.bf16.mxu0 0
    %1546 = vmatpush1.bf16.msra.mxu0 0
    %1547 = vmatprep.subr.bf16.mxu0 0
    %1548 = vmatpush1.bf16.msra.mxu0 0
    %1549 = vmatprep.subr.bf16.mxu0 0
    %1550 = vmatpush1.bf16.msra.mxu0 0
    %1551 = vmatprep.subr.bf16.mxu0 0
    %1552 = vmatpush1.bf16.msra.mxu0 0
    %1553 = vmatprep.mubr.bf16.mxu0 0
    %1554 = vmatmul.mubr.bf16.gmra.mrb[0].mxu0 %v1519
    %v1555 = vpop.f32.mrb[0].mxu0
    %v1556 = vadd.f32 %v1516, %v1555
    %v1557 = vpop.f32.mrb[0].mxu0
    %v1558 = vpop.f32.mrb[0].mxu0
    %v1559 = vadd.f32 %v1516, %v1558
    %v1560 = vpop.f32.mrb[0].mxu0
    %1561 = vdwg.mxu0
    %v1562 = vmul.f32 %v1556, 0.70710677
    %v1563 = vmul.f32 %v1559, 0.70710677
    %v1564 = vand.u32 2147483647, %v1562
    %v1565 = vand.u32 2147483647, %v1563
    %v1566 = vmul.f32 %v1564, 0.3275911
    %v1567 = vmul.f32 %v1565, 0.3275911
    %v1568 = vadd.f32 %v1566, 1.0
    %v1569 = vadd.f32 %v1567, 1.0
    %v1570 = vrcp.pop %v1568
    %v1571 = vmul.f32 1.0, %v1570
    %v1572 = vrcp.pop %v1569
    %v1573 = vmul.f32 1.0, %v1572
    %v1574 = vmul.f32 %v1571, 1.0614054
    %v1575 = vmul.f32 %v1573, 1.0614054
    %v1576 = vadd.f32 %v1574, -1.4531521
    %v1577 = vadd.f32 %v1575, -1.4531521
    %v1578 = vmul.f32 %v1571, %v1576
    %v1579 = vmul.f32 %v1573, %v1577
    %v1580 = vadd.f32 %v1578, 1.4214138
    %v1581 = vadd.f32 %v1579, 1.4214138
    %v1582 = vmul.f32 %v1571, %v1580
    %v1583 = vmul.f32 %v1573, %v1581
    %v1584 = vadd.f32 %v1582, -0.28449672
    %v1585 = vadd.f32 %v1583, -0.28449672
    %v1586 = vmul.f32 %v1571, %v1584
    %v1587 = vmul.f32 %v1573, %v1585
    %v1588 = vadd.f32 %v1586, 0.2548296
    %v1589 = vadd.f32 %v1587, 0.2548296
    %v1590 = vmul.f32 %v1571, %v1588
    %v1591 = vmul.f32 %v1573, %v1589
    %v1592 = vsub.f32 0.0, %v1564
    %v1593 = vsub.f32 0.0, %v1565
    %v1594 = vmul.f32 %v1592, %v1564
    %v1595 = vmul.f32 %v1593, %v1565
    %v1596 = vmul.f32 %v1594, 1.442695
    %v1597 = vpow.pop %v1596
    %v1598 = vmul.f32 %v1595, 1.442695
    %v1599 = vpow.pop %v1598
    %v1600 = vmul.f32 %v1590, %v1597
    %v1601 = vmul.f32 %v1591, %v1599
    %v1602 = vsub.f32 1.0, %v1600
    %v1603 = vsub.f32 1.0, %v1601
    %vm1604 = vcmp.lt.f32.partialorder %v1562, 0.0
    %vm1605 = vcmp.lt.f32.partialorder %v1563, 0.0
    %v1606 = vsub.f32 0.0, %v1602
    %v1607 = vsub.f32 0.0, %v1603
    %v1608 = vsel %vm1604, %v1606, %v1602
    %v1609 = vsel %vm1605, %v1607, %v1603
    %v1610 = vmul.f32 %v1556, 0.5
    %v1611 = vmul.f32 %v1559, 0.5
    %v1612 = vadd.f32 %v1608, 1.0
    %v1613 = vadd.f32 %v1609, 1.0
    %v1614 = vmul.f32 %v1610, %v1612
    %v1615 = vmul.f32 %v1611, %v1613
    %v1616 = vpack.c.bf16 %v1615, %v1614
    %v1617 = vld [vmem:[%s14] sm:$0xff]
    %v1618 = vld [vmem:[%s14 + $0x8] sm:$0xff]
    %v1619 = vld [vmem:[%s14 + $0x10] sm:$0xff]
    %v1620 = vld [vmem:[%s14 + $0x18] sm:$0xff]
    %v1621 = vpack.c.bf16 %v1618, %v1617
    %v1622 = vpack.c.bf16 %v1620, %v1619
    %v1623 = vld [vmem:[%s15] sm:$0x1]
    %v1625 = vlaneseq
    %v1626 = vshrl.u32 %v1625, 7
    %v1627 = vsub.s32 0, %v1626
    %v1628 = vrot.slane %v1623, %v1627
    %v1631 = vsel %vm196, %v1616, 0
    %1633 = vmatprep.subr.bf16.mxu0 0
    %1634 = vmatpush1.bf16.msra.mxu0 %v1621
    %1635 = vmatprep.subr.bf16.mxu0 0
    %1636 = vmatpush1.bf16.msra.mxu0 %v1622
    %1637 = vmatprep.subr.bf16.mxu0 0
    %1638 = vmatpush1.bf16.msra.mxu0 0
    %1639 = vmatprep.subr.bf16.mxu0 0
    %1640 = vmatpush1.bf16.msra.mxu0 0
    %1641 = vmatprep.subr.bf16.mxu0 0
    %1642 = vmatpush1.bf16.msra.mxu0 0
    %1643 = vmatprep.subr.bf16.mxu0 0
    %1644 = vmatpush1.bf16.msra.mxu0 0
    %1645 = vmatprep.subr.bf16.mxu0 0
    %1646 = vmatpush1.bf16.msra.mxu0 0
    %1647 = vmatprep.subr.bf16.mxu0 0
    %1648 = vmatpush1.bf16.msra.mxu0 0
    %1649 = vmatprep.subr.bf16.mxu0 0
    %1650 = vmatpush1.bf16.msra.mxu0 0
    %1651 = vmatprep.subr.bf16.mxu0 0
    %1652 = vmatpush1.bf16.msra.mxu0 0
    %1653 = vmatprep.subr.bf16.mxu0 0
    %1654 = vmatpush1.bf16.msra.mxu0 0
    %1655 = vmatprep.subr.bf16.mxu0 0
    %1656 = vmatpush1.bf16.msra.mxu0 0
    %1657 = vmatprep.subr.bf16.mxu0 0
    %1658 = vmatpush1.bf16.msra.mxu0 0
    %1659 = vmatprep.subr.bf16.mxu0 0
    %1660 = vmatpush1.bf16.msra.mxu0 0
    %1661 = vmatprep.subr.bf16.mxu0 0
    %1662 = vmatpush1.bf16.msra.mxu0 0
    %1663 = vmatprep.subr.bf16.mxu0 0
    %1664 = vmatpush1.bf16.msra.mxu0 0
    %1665 = vmatprep.mubr.bf16.mxu0 0
    %1666 = vmatmul.mubr.bf16.gmra.mrb[0].mxu0 %v1631
    %v1667 = vpop.f32.mrb[0].mxu0
    %v1668 = vadd.f32 %v1628, %v1667
    %v1669 = vpop.f32.mrb[0].mxu0
    %v1670 = vpop.f32.mrb[0].mxu0
    %v1671 = vadd.f32 %v1628, %v1670
    %v1672 = vpop.f32.mrb[0].mxu0
    %1673 = vdwg.mxu0
    %v1674 = vadd.f32 %v1458, %v1668
    %v1675 = vadd.f32 %v1459, %v1671
    %v1676 = vpack.c.bf16 %v1675, %v1674
    %v1677 = vld [vmem:[%s16] sm:$0xff]
    %v1678 = vld [vmem:[%s16 + $0x8] sm:$0xff]
    %v1679 = vld [vmem:[%s16 + $0x10] sm:$0xff]
    %v1680 = vld [vmem:[%s16 + $0x18] sm:$0xff]
    %v1681 = vpack.c.bf16 %v1678, %v1677
    %v1682 = vpack.c.bf16 %v1680, %v1679
    %v1683 = vld [vmem:[%s17] sm:$0x1]
    %v1685 = vlaneseq
    %v1686 = vshrl.u32 %v1685, 7
    %v1687 = vsub.s32 0, %v1686
    %v1688 = vrot.slane %v1683, %v1687
    %v1691 = vsel %vm196, %v1676, 0
    %1693 = vmatprep.subr.bf16.mxu0 0
    %1694 = vmatpush1.bf16.msra.mxu0 %v1681
    %1695 = vmatprep.subr.bf16.mxu0 0
    %1696 = vmatpush1.bf16.msra.mxu0 %v1682
    %1697 = vmatprep.subr.bf16.mxu0 0
    %1698 = vmatpush1.bf16.msra.mxu0 0
    %1699 = vmatprep.subr.bf16.mxu0 0
    %1700 = vmatpush1.bf16.msra.mxu0 0
    %1701 = vmatprep.subr.bf16.mxu0 0
    %1702 = vmatpush1.bf16.msra.mxu0 0
    %1703 = vmatprep.subr.bf16.mxu0 0
    %1704 = vmatpush1.bf16.msra.mxu0 0
    %1705 = vmatprep.subr.bf16.mxu0 0
    %1706 = vmatpush1.bf16.msra.mxu0 0
    %1707 = vmatprep.subr.bf16.mxu0 0
    %1708 = vmatpush1.bf16.msra.mxu0 0
    %1709 = vmatprep.subr.bf16.mxu0 0
    %1710 = vmatpush1.bf16.msra.mxu0 0
    %1711 = vmatprep.subr.bf16.mxu0 0
    %1712 = vmatpush1.bf16.msra.mxu0 0
    %1713 = vmatprep.subr.bf16.mxu0 0
    %1714 = vmatpush1.bf16.msra.mxu0 0
    %1715 = vmatprep.subr.bf16.mxu0 0
    %1716 = vmatpush1.bf16.msra.mxu0 0
    %1717 = vmatprep.subr.bf16.mxu0 0
    %1718 = vmatpush1.bf16.msra.mxu0 0
    %1719 = vmatprep.subr.bf16.mxu0 0
    %1720 = vmatpush1.bf16.msra.mxu0 0
    %1721 = vmatprep.subr.bf16.mxu0 0
    %1722 = vmatpush1.bf16.msra.mxu0 0
    %1723 = vmatprep.subr.bf16.mxu0 0
    %1724 = vmatpush1.bf16.msra.mxu0 0
    %1725 = vmatprep.mubr.bf16.mxu0 0
    %1726 = vmatmul.mubr.bf16.gmra.mrb[0].mxu0 %v1691
    %v1727 = vpop.f32.mrb[0].mxu0
    %v1728 = vadd.f32 %v1688, %v1727
    %v1729 = vpop.f32.mrb[0].mxu0
    %v1730 = vpop.f32.mrb[0].mxu0
    %v1731 = vadd.f32 %v1688, %v1730
    %v1732 = vpop.f32.mrb[0].mxu0
    %1733 = vdwg.mxu0
    %vm1734 = vcmask 31744
    %1735 = vst.msk [vmem:[%s18] sm:$0xff] %vm1734, %v1728
    %1736 = vst.msk [vmem:[%s18 + $0x8] sm:$0xff] %vm1734, %v1731
    // Predicated region
    $region94: #{tpu_custom_call.1} parent=1 // pred_check
      _
    $region95: #{tpu_custom_call.1} parent=1 // pred_check_branch
      %1738 = sbr.rel (0) target = $region97
    $region96: #{tpu_custom_call.1} parent=1 // pred_region
      _
    $region97: #{tpu_custom_call.1} parent=1 // pred_fallthru
      _
    // Predicated region
    $region98: #{tpu_custom_call.1} parent=1 // pred_check
      _
    $region99: #{tpu_custom_call.1} parent=1 // pred_check_branch
      %1740 = sbr.rel (0) target = $region101
    $region100: #{tpu_custom_call.1} parent=1 // pred_region
      %s1742 = ssub.s32 256, 256
      %1743 = vsyncadd [#allocation4], %s1742
      %s1744 = sshll.u32 [#allocation11], 4
      %s1745 = int_to_ptr.vmem [resolvable:$true] %s1744
      %1750 = dma.vmem_to_hbm [thread:$0]  %s1745, 256, %s19, [#allocation4], 128, 128, 8
    $region101: #{tpu_custom_call.1} parent=1 // pred_fallthru
      _
    // Predicated region
    $region102: #{tpu_custom_call.1} parent=1 // pred_check
      _
    $region103: #{tpu_custom_call.1} parent=1 // pred_check_branch
      %1752 = sbr.rel (0) target = $region105
    $region104: #{tpu_custom_call.1} parent=1 // pred_region
      _
    $region105: #{tpu_custom_call.1} parent=1 // pred_fallthru
      _
    // Predicated region
    $region106: #{tpu_custom_call.1} parent=1 // pred_check
      _
    $region107: #{tpu_custom_call.1} parent=1 // pred_check_branch
      %1754 = sbr.rel (0) target = $region109
    $region108: #{tpu_custom_call.1} parent=1 // pred_region
      %1755 = dma.done [#allocation4], 256
    $region109: #{tpu_custom_call.1} parent=1 // pred_fallthru
      _
    %1756 = vsyncpa [#allocation3], 1
    %1757 = vsyncpa [#allocation6], 1
    %1758 = vsyncpa [#allocation9], 1
    %1759 = vsyncpa [#allocation4], 1

</llo_original>
